<compile_context>
chip_gen: v7x
topology: tpu7x:2x2x1
jax: 0.10.0
libtpu: 0.0.40
codegen_flags: <defaults>
</compile_context>

<pallas_src>
import jax
import jax.numpy as jnp
from jax import lax
from jax.experimental import pallas as pl
from jax.experimental.pallas import tpu as pltpu

# ----------------------------- model dims (small) ---------------------------
B = 2               # batch
L = 8               # maxL (sequence length)
M = B * L           # 16 rows: batch folded into the sublane/M dimension
V = 33              # ESM alphabet size
VROW = 128          # embedding-table rows padded to lane width (one-hot gather)
VPAD = 128          # LM-head vocab padded to lane width
D = 128             # hidden size of the synthetic PretrainESM stand-in
F = 256             # FFN hidden
E = 1280            # output embedding dim (matches MemoESM.initoutput: 1280)
HTOT = E + VPAD     # 1408 fused head columns: [we (1280) | wlm padded (128)]

# column offsets inside the fused D-row weight wcat = [emb|wqkv|wo|w1|wh]
C_EMB = 0
C_QKV = C_EMB + VROW          # 128
C_WO = C_QKV + 3 * D          # 512
C_W1 = C_WO + D               # 640
C_WH = C_W1 + F               # 896
WTOT = C_WH + HTOT            # 2304

# column offsets inside the fused bias bcat = [b1 | blm | bh]
BC_B1 = 0
BC_BLM = F                    # 256
BC_BH = F + VPAD              # 384
BTOT = BC_BH + HTOT           # 1792

PRED_ABS = E                  # pred id lives in lane 0 of the pad slab (col 1280)
CONF_ABS = E + 1              # conf lives in lane 1 of the pad slab (col 1281)


# --------------------------------- kernel -----------------------------------
def esm_kernel(ids_ref, mask_ref, bias_ref, wcat_ref, w2h_ref, bcat_ref, out_ref):
    mask = mask_ref[...]          # (M, 1)  f32 attention mask (per row)
    bias = bias_ref[...]          # (M, M)  f32 block-diagonal + key-padding bias

    # ---- fused token-embedding gather: one-hot (M, 128) @ emb (128, D) ----
    ids = ids_ref[...]                                            # (M, 1) int32
    vocab_iota = lax.broadcasted_iota(jnp.int32, (M, VROW), 1)
    onehot = (vocab_iota == ids).astype(jnp.bfloat16)             # (M, VROW)
    x = jnp.dot(onehot, wcat_ref[:, C_EMB:C_EMB + VROW],
                preferred_element_type=jnp.float32)               # (M, D) f32
    xb = x.astype(jnp.bfloat16)

    # ---- self attention (single head), fused QKV projection ----
    qkv = jnp.dot(xb, wcat_ref[:, C_QKV:C_QKV + 3 * D],
                  preferred_element_type=jnp.float32)             # (M, 3D)
    q = qkv[:, :D]
    k = qkv[:, D:2 * D]
    v = qkv[:, 2 * D:]
    scale = 1.0 / jnp.sqrt(jnp.float32(D))
    scores = lax.dot_general(q, k, (((1,), (1,)), ((), ())),
                             preferred_element_type=jnp.float32) * scale + bias
    scores = scores - jnp.max(scores, axis=-1, keepdims=True)
    p = jnp.exp(scores)
    p = p * pl.reciprocal(jnp.sum(p, axis=-1, keepdims=True), approx=True)
    ctx = jnp.dot(p, v, preferred_element_type=jnp.float32)
    h = jnp.dot(ctx.astype(jnp.bfloat16), wcat_ref[:, C_WO:C_WO + D],
                preferred_element_type=jnp.float32) + x           # (M, D) f32

    # ---- FFN first layer (second layer folded into the head: w2h = w2@wh) ----
    b1 = bcat_ref[:, BC_B1:BC_B1 + F]
    f = jnp.maximum(
        jnp.dot(h.astype(jnp.bfloat16), wcat_ref[:, C_W1:C_W1 + F],
                preferred_element_type=jnp.float32) + b1, 0.0)    # (M, F)

    # ---- fused output heads: chunk = h2 @ [we|wlm] = h@wh + f@w2h + bh ----
    bh = bcat_ref[:, BC_BH:]
    chunk = (jnp.dot(h.astype(jnp.bfloat16), wcat_ref[:, C_WH:],
                     preferred_element_type=jnp.float32)
             + jnp.dot(f.astype(jnp.bfloat16), w2h_ref[...],
                       preferred_element_type=jnp.float32)
             + bh)                                                # (M, HTOT)

    # ---- LM head: conf = max softmax prob, pred = argmax over vocab ----
    blm = bcat_ref[:, BC_BLM:BC_BLM + VPAD]
    logits = chunk[:, E:] + blm                                   # (M, VPAD)
    lmax = jnp.max(logits, axis=-1, keepdims=True)
    denom = jnp.sum(jnp.exp(logits - lmax), axis=-1, keepdims=True)
    conf = 1.0 / denom                                            # exact for parity
    vidx = lax.broadcasted_iota(jnp.int32, logits.shape, 1)
    pred = jnp.min(jnp.where(logits == lmax, vidx, VPAD),
                   axis=-1, keepdims=True)                        # (M, 1)

    # ---- lane-aligned epilogue: embeds slab + single 128-wide pred/conf slab ----
    lane = lax.broadcasted_iota(jnp.int32, (M, VPAD), 1)
    slab = jnp.where(lane == 0, pred.astype(jnp.float32) * mask,
           jnp.where(lane == 1, conf * mask, 0.0))                # (M, 128)
    out_ref[:, :E] = chunk[:, :E] * mask                          # masked scatter
    out_ref[:, E:] = slab


# --------------------------------- params -----------------------------------
def init_params(key):
    ks = jax.random.split(key, 9)
    s = 0.02
    emb = jax.random.normal(ks[0], (V, D), jnp.float32) * s
    emb_pad = jnp.zeros((VROW, D), jnp.float32).at[:V].set(emb)
    wq = jax.random.normal(ks[1], (D, D), jnp.float32) * s
    wk = jax.random.normal(ks[2], (D, D), jnp.float32) * s
    wv = jax.random.normal(ks[3], (D, D), jnp.float32) * s
    wqkv = jnp.concatenate([wq, wk, wv], axis=1)                    # (D, 3D)
    wo = jax.random.normal(ks[4], (D, D), jnp.float32) * s
    w1 = jax.random.normal(ks[5], (D, F), jnp.float32) * s
    b1 = jnp.zeros((1, F), jnp.float32)
    w2 = jax.random.normal(ks[6], (F, D), jnp.float32) * s
    b2 = jnp.zeros((1, D), jnp.float32)
    we = jax.random.normal(ks[7], (D, E), jnp.float32) * s
    wlm = jax.random.normal(ks[8], (D, V), jnp.float32) * s

    # fused head weight: [we (1280) | wlm padded to 128]
    wh = jnp.zeros((D, HTOT), jnp.float32)
    wh = wh.at[:, :E].set(we)
    wh = wh.at[:, E:E + V].set(wlm)
    # fold FFN second layer into the head: h2@wh = h@wh + f@(w2@wh) + b2@wh
    w2h = jnp.dot(w2, wh)                                            # (F, HTOT)
    bh = jnp.dot(b2, wh)                                             # (1, HTOT)
    # logits bias: -1e30 on padded vocab columns so softmax/argmax ignore them
    blm = jnp.full((1, VPAD), -1e30, jnp.float32).at[:, :V].set(0.0)

    # fused inputs: one big D-row weight, one FFN->head weight, one bias strip
    wcat = jnp.concatenate([emb_pad, wqkv, wo, w1, wh],
                           axis=1).astype(jnp.bfloat16)              # (D, 2304)
    assert wcat.shape == (D, WTOT)
    bcat = jnp.concatenate([b1, blm, bh], axis=1)                    # (1, 1792)
    assert bcat.shape == (1, BTOT)
    return dict(wcat=wcat, w2h=w2h.astype(jnp.bfloat16), bcat=bcat)


# --------------------------------- wrapper ----------------------------------
@jax.jit
def _pallas_forward(ids_col, mask_col, attn_bias, params):
    full = lambda shape: pl.BlockSpec(shape, lambda i: (0, 0))
    grid_spec = pltpu.PrefetchScalarGridSpec(
        num_scalar_prefetch=0,
        grid=(1,),                              # single step: encoder runs once
        in_specs=[
            full((M, 1)),                       # token ids (int32)
            full((M, 1)),                       # attention mask column (f32)
            full((M, M)),                       # attention bias (f32)
            full((D, WTOT)),                    # fused D-row weights (bf16)
            full((F, HTOT)),                    # folded w2 @ wh (bf16)
            full((1, BTOT)),                    # fused biases (f32)
        ],
        out_specs=pl.BlockSpec((M, E + VPAD), lambda i: (0, 0)),
    )
    return pl.pallas_call(
        esm_kernel,
        out_shape=jax.ShapeDtypeStruct((M, E + VPAD), jnp.float32),
        grid_spec=grid_spec,
        compiler_params=pltpu.CompilerParams(
            dimension_semantics=("arbitrary",)),
    )(ids_col, mask_col, attn_bias,
      params['wcat'], params['w2h'], params['bcat'])


def memo_esm_forward(batch, params, use_memory=False):
    """JAX equivalent of MemoESM.forward (use_memory=False path)."""
    del use_memory  # TODO(synk): dict-based memory retrieval is host-side only.
    probs = batch['probs']
    b, max_l, _ = probs.shape
    assert (b, max_l) == (B, L)
    pred_ids_in = batch['pred_ids']
    mask = batch['attention_mask']

    # glue: row mask, block-diagonal + key-padding bias (embedding gather is fused)
    ids_col = pred_ids_in.astype(jnp.int32).reshape(M, 1)
    maskf = mask.astype(jnp.float32)
    mask_col = maskf.reshape(M, 1)
    ex = jnp.arange(M) // L
    same_example = ex[:, None] == ex[None, :]
    allow = same_example & (maskf.reshape(M)[None, :] > 0)
    attn_bias = jnp.where(allow, 0.0, -1e9).astype(jnp.float32)    # (M, M)

    head = _pallas_forward(ids_col, mask_col, attn_bias, params)   # (M, 1408)
    return {
        'title': list(batch['title']),
        'pred_ids': jnp.round(head[:, PRED_ABS]).astype(jnp.int32).reshape(B, L),
        'confs': head[:, CONF_ABS].reshape(B, L),
        'embeds': head[:, :E].reshape(B, L, E),
        'attention_mask': mask,
    }


# ---------------------------------- main ------------------------------------
if __name__ == "__main__":
    key = jax.random.PRNGKey(0)
    k_param, k_ids, k_probs = jax.random.split(key, 3)

    params = init_params(k_param)

    pred_ids = jax.random.randint(k_ids, (B, L), 4, 24, dtype=jnp.int32)
    attention_mask = jnp.array(
        [[1, 1, 1, 1, 1, 1, 1, 1],
         [1, 1, 1, 1, 1, 0, 0, 0]], dtype=jnp.int32)
    probs = jax.random.uniform(k_probs, (B, L, V), jnp.float32)

    batch = {
        'title': ['protA', 'protB'],
        'probs': probs,
        'pred_ids': pred_ids,
        'attention_mask': attention_mask,
        'confs': jnp.ones((B, L), jnp.float32),
    }

    out = memo_esm_forward(batch, params, use_memory=False)
    jax.block_until_ready((out['pred_ids'], out['confs'], out['embeds']))

    assert out['pred_ids'].shape == (B, L)
    assert out['confs'].shape == (B, L)
    assert out['embeds'].shape == (B, L, E)
    # padded positions stay zero (initoutput + masked update semantics)
    assert bool(jnp.all(out['confs'][1, 5:] == 0.0))
    assert bool(jnp.all(out['embeds'][1, 5:] == 0.0))
    assert bool(jnp.all(out['pred_ids'][1, 5:] == 0))
    # valid positions have a real confidence in (0, 1]
    assert bool(jnp.all(out['confs'][0] > 0.0))
    assert bool(jnp.all(out['confs'][0] <= 1.0))
    # valid pred ids land inside the real (unpadded) vocab
    assert bool(jnp.all(out['pred_ids'][0] < V))

    print("KERNEL_OK")
</pallas_src>

<mosaic_0001>
module attributes {stable_mosaic.version = 11 : i64} {
  func.func @esm_kernel(%arg0: i32, %arg1: memref<16x1xi32, #tpu.memory_space<vmem>>, %arg2: memref<16x1xf32, #tpu.memory_space<vmem>>, %arg3: memref<16x16xf32, #tpu.memory_space<vmem>>, %arg4: memref<128x2304xbf16, #tpu.memory_space<vmem>>, %arg5: memref<256x1408xbf16, #tpu.memory_space<vmem>>, %arg6: memref<1x1792xf32, #tpu.memory_space<vmem>>, %arg7: memref<16x1408xf32, #tpu.memory_space<vmem>>) attributes {dimension_semantics = [#tpu.dimension_semantics<arbitrary>], iteration_bounds = array<i64: 1>, scalar_prefetch = 0 : i64, scratch_operands = 0 : i64, tpu.core_type = #tpu.core_type<tc>, window_params = [{pipeline_mode = #tpu.pipeline_mode<synchronous>, transform_indices = @transform_0, window_bounds = array<i64: 16, 1>}, {pipeline_mode = #tpu.pipeline_mode<synchronous>, transform_indices = @transform_1, window_bounds = array<i64: 16, 1>}, {pipeline_mode = #tpu.pipeline_mode<synchronous>, transform_indices = @transform_2, window_bounds = array<i64: 16, 16>}, {pipeline_mode = #tpu.pipeline_mode<synchronous>, transform_indices = @transform_3, window_bounds = array<i64: 128, 2304>}, {pipeline_mode = #tpu.pipeline_mode<synchronous>, transform_indices = @transform_4, window_bounds = array<i64: 256, 1408>}, {pipeline_mode = #tpu.pipeline_mode<synchronous>, transform_indices = @transform_5, window_bounds = array<i64: 1, 1792>}, {pipeline_mode = #tpu.pipeline_mode<synchronous>, transform_indices = @transform_6, window_bounds = array<i64: 16, 1408>}]} {
    %c0 = arith.constant 0 : index
    %c0_0 = arith.constant 0 : index
    %0 = vector.load %arg2[%c0, %c0_0] : memref<16x1xf32, #tpu.memory_space<vmem>>, vector<16x1xf32>
    %c0_1 = arith.constant 0 : index
    %c0_2 = arith.constant 0 : index
    %1 = vector.load %arg3[%c0_1, %c0_2] : memref<16x16xf32, #tpu.memory_space<vmem>>, vector<16x16xf32>
    %c0_3 = arith.constant 0 : index
    %c0_4 = arith.constant 0 : index
    %2 = vector.load %arg1[%c0_3, %c0_4] : memref<16x1xi32, #tpu.memory_space<vmem>>, vector<16x1xi32>
    %3 = tpu.iota {dimensions = array<i32: 1>} : vector<16x128xi32>
    %4 = vector.broadcast %2 : vector<16x1xi32> to vector<16x128xi32>
    %5 = arith.cmpi eq, %3, %4 : vector<16x128xi32>
    %6 = arith.extui %5 : vector<16x128xi1> to vector<16x128xi32>
    %7 = arith.sitofp %6 : vector<16x128xi32> to vector<16x128xf32>
    %8 = arith.truncf %7 : vector<16x128xf32> to vector<16x128xbf16>
    %c0_5 = arith.constant 0 : index
    %c0_6 = arith.constant 0 : index
    %9 = vector.load %arg4[%c0_5, %c0_6] : memref<128x2304xbf16, #tpu.memory_space<vmem>>, vector<128x128xbf16>
    %cst = arith.constant dense<0.000000e+00> : vector<16x128xf32>
    %10 = tpu.matmul %8, %9, %cst {dimension_numbers = #tpu.dot_dimension_numbers<[1], [0], [0], [1], [0, 0, 1, 1], [], []>} : vector<16x128xbf16>, vector<128x128xbf16>, vector<16x128xf32> -> vector<16x128xf32>
    %11 = arith.truncf %10 : vector<16x128xf32> to vector<16x128xbf16>
    %c0_7 = arith.constant 0 : index
    %c128 = arith.constant 128 : index
    %12 = vector.load %arg4[%c0_7, %c128] : memref<128x2304xbf16, #tpu.memory_space<vmem>>, vector<128x384xbf16>
    %cst_8 = arith.constant dense<0.000000e+00> : vector<16x384xf32>
    %13 = tpu.matmul %11, %12, %cst_8 {dimension_numbers = #tpu.dot_dimension_numbers<[1], [0], [0], [1], [0, 0, 1, 1], [], []>} : vector<16x128xbf16>, vector<128x384xbf16>, vector<16x384xf32> -> vector<16x384xf32>
    %14 = vector.extract_strided_slice %13 {offsets = [0, 0], sizes = [16, 128], strides = [1, 1]} : vector<16x384xf32> to vector<16x128xf32>
    %15 = vector.extract_strided_slice %13 {offsets = [0, 128], sizes = [16, 128], strides = [1, 1]} : vector<16x384xf32> to vector<16x128xf32>
    %16 = vector.extract_strided_slice %13 {offsets = [0, 256], sizes = [16, 128], strides = [1, 1]} : vector<16x384xf32> to vector<16x128xf32>
    %cst_9 = arith.constant 1.280000e+02 : f32
    %17 = math.sqrt %cst_9 : f32
    %cst_10 = arith.constant 1.000000e+00 : f32
    %18 = arith.divf %cst_10, %17 : f32
    %cst_11 = arith.constant dense<0.000000e+00> : vector<16x16xf32>
    %19 = tpu.matmul %14, %15, %cst_11 {dimension_numbers = #tpu.dot_dimension_numbers<[1], [1], [0], [0], [0, 0, 1, 0], [], []>} : vector<16x128xf32>, vector<16x128xf32>, vector<16x16xf32> -> vector<16x16xf32>
    %20 = vector.broadcast %18 : f32 to vector<16x16xf32>
    %21 = arith.mulf %19, %20 : vector<16x16xf32>
    %22 = arith.addf %21, %1 : vector<16x16xf32>
    %cst_12 = arith.constant dense<0xFF800000> : vector<16xf32>
    %23 = vector.multi_reduction <maximumf>, %22, %cst_12 [1] : vector<16x16xf32> to vector<16xf32>
    %24 = vector.shape_cast %23 : vector<16xf32> to vector<16x1xf32>
    %25 = vector.broadcast %24 : vector<16x1xf32> to vector<16x16xf32>
    %26 = arith.subf %22, %25 : vector<16x16xf32>
    %27 = math.exp %26 : vector<16x16xf32>
    %cst_13 = arith.constant dense<0.000000e+00> : vector<16xf32>
    %28 = vector.multi_reduction <add>, %27, %cst_13 [1] : vector<16x16xf32> to vector<16xf32>
    %29 = vector.shape_cast %28 : vector<16xf32> to vector<16x1xf32>
    %30 = tpu.reciprocal %29 {approx = true} : vector<16x1xf32> -> vector<16x1xf32>
    %31 = vector.broadcast %30 : vector<16x1xf32> to vector<16x16xf32>
    %32 = arith.mulf %27, %31 : vector<16x16xf32>
    %cst_14 = arith.constant dense<0.000000e+00> : vector<16x128xf32>
    %33 = tpu.matmul %32, %16, %cst_14 {dimension_numbers = #tpu.dot_dimension_numbers<[1], [0], [0], [1], [0, 0, 1, 1], [], []>} : vector<16x16xf32>, vector<16x128xf32>, vector<16x128xf32> -> vector<16x128xf32>
    %34 = arith.truncf %33 : vector<16x128xf32> to vector<16x128xbf16>
    %c0_15 = arith.constant 0 : index
    %c512 = arith.constant 512 : index
    %35 = vector.load %arg4[%c0_15, %c512] : memref<128x2304xbf16, #tpu.memory_space<vmem>>, vector<128x128xbf16>
    %cst_16 = arith.constant dense<0.000000e+00> : vector<16x128xf32>
    %36 = tpu.matmul %34, %35, %cst_16 {dimension_numbers = #tpu.dot_dimension_numbers<[1], [0], [0], [1], [0, 0, 1, 1], [], []>} : vector<16x128xbf16>, vector<128x128xbf16>, vector<16x128xf32> -> vector<16x128xf32>
    %37 = arith.addf %36, %10 : vector<16x128xf32>
    %c0_17 = arith.constant 0 : index
    %c0_18 = arith.constant 0 : index
    %38 = vector.load %arg6[%c0_17, %c0_18] : memref<1x1792xf32, #tpu.memory_space<vmem>>, vector<1x256xf32>
    %39 = arith.truncf %37 : vector<16x128xf32> to vector<16x128xbf16>
    %c0_19 = arith.constant 0 : index
    %c640 = arith.constant 640 : index
    %40 = vector.load %arg4[%c0_19, %c640] : memref<128x2304xbf16, #tpu.memory_space<vmem>>, vector<128x256xbf16>
    %cst_20 = arith.constant dense<0.000000e+00> : vector<16x256xf32>
    %41 = tpu.matmul %39, %40, %cst_20 {dimension_numbers = #tpu.dot_dimension_numbers<[1], [0], [0], [1], [0, 0, 1, 1], [], []>} : vector<16x128xbf16>, vector<128x256xbf16>, vector<16x256xf32> -> vector<16x256xf32>
    %42 = vector.broadcast %38 : vector<1x256xf32> to vector<16x256xf32>
    %43 = arith.addf %41, %42 : vector<16x256xf32>
    %cst_21 = arith.constant 0.000000e+00 : f32
    %44 = vector.broadcast %cst_21 : f32 to vector<16x256xf32>
    %45 = arith.maximumf %43, %44 : vector<16x256xf32>
    %c0_22 = arith.constant 0 : index
    %c384 = arith.constant 384 : index
    %46 = vector.load %arg6[%c0_22, %c384] : memref<1x1792xf32, #tpu.memory_space<vmem>>, vector<1x1408xf32>
    %47 = arith.truncf %37 : vector<16x128xf32> to vector<16x128xbf16>
    %c0_23 = arith.constant 0 : index
    %c896 = arith.constant 896 : index
    %48 = vector.load %arg4[%c0_23, %c896] : memref<128x2304xbf16, #tpu.memory_space<vmem>>, vector<128x1408xbf16>
    %cst_24 = arith.constant dense<0.000000e+00> : vector<16x1408xf32>
    %49 = tpu.matmul %47, %48, %cst_24 {dimension_numbers = #tpu.dot_dimension_numbers<[1], [0], [0], [1], [0, 0, 1, 1], [], []>} : vector<16x128xbf16>, vector<128x1408xbf16>, vector<16x1408xf32> -> vector<16x1408xf32>
    %50 = arith.truncf %45 : vector<16x256xf32> to vector<16x256xbf16>
    %c0_25 = arith.constant 0 : index
    %c0_26 = arith.constant 0 : index
    %51 = vector.load %arg5[%c0_25, %c0_26] : memref<256x1408xbf16, #tpu.memory_space<vmem>>, vector<256x1408xbf16>
    %cst_27 = arith.constant dense<0.000000e+00> : vector<16x1408xf32>
    %52 = tpu.matmul %50, %51, %cst_27 {dimension_numbers = #tpu.dot_dimension_numbers<[1], [0], [0], [1], [0, 0, 1, 1], [], []>} : vector<16x256xbf16>, vector<256x1408xbf16>, vector<16x1408xf32> -> vector<16x1408xf32>
    %53 = arith.addf %49, %52 : vector<16x1408xf32>
    %54 = vector.broadcast %46 : vector<1x1408xf32> to vector<16x1408xf32>
    %55 = arith.addf %53, %54 : vector<16x1408xf32>
    %c0_28 = arith.constant 0 : index
    %c256 = arith.constant 256 : index
    %56 = vector.load %arg6[%c0_28, %c256] : memref<1x1792xf32, #tpu.memory_space<vmem>>, vector<1x128xf32>
    %57 = vector.extract_strided_slice %55 {offsets = [0, 1280], sizes = [16, 128], strides = [1, 1]} : vector<16x1408xf32> to vector<16x128xf32>
    %58 = vector.broadcast %56 : vector<1x128xf32> to vector<16x128xf32>
    %59 = arith.addf %57, %58 : vector<16x128xf32>
    %cst_29 = arith.constant dense<0xFF800000> : vector<16xf32>
    %60 = vector.multi_reduction <maximumf>, %59, %cst_29 [1] : vector<16x128xf32> to vector<16xf32>
    %61 = vector.shape_cast %60 : vector<16xf32> to vector<16x1xf32>
    %62 = vector.broadcast %61 : vector<16x1xf32> to vector<16x128xf32>
    %63 = arith.subf %59, %62 : vector<16x128xf32>
    %64 = math.exp %63 : vector<16x128xf32>
    %cst_30 = arith.constant dense<0.000000e+00> : vector<16xf32>
    %65 = vector.multi_reduction <add>, %64, %cst_30 [1] : vector<16x128xf32> to vector<16xf32>
    %66 = vector.shape_cast %65 : vector<16xf32> to vector<16x1xf32>
    %cst_31 = arith.constant 1.000000e+00 : f32
    %67 = vector.broadcast %cst_31 : f32 to vector<16x1xf32>
    %68 = arith.divf %67, %66 : vector<16x1xf32>
    %69 = tpu.iota {dimensions = array<i32: 1>} : vector<16x128xi32>
    %70 = vector.broadcast %61 : vector<16x1xf32> to vector<16x128xf32>
    %71 = arith.cmpf oeq, %59, %70 : vector<16x128xf32>
    %c128_i32 = arith.constant 128 : i32
    %72 = vector.broadcast %c128_i32 : i32 to vector<16x128xi32>
    %73 = arith.select %71, %69, %72 : vector<16x128xi1>, vector<16x128xi32>
    %cst_32 = arith.constant dense<2147483647> : vector<16xi32>
    %74 = vector.multi_reduction <minsi>, %73, %cst_32 [1] : vector<16x128xi32> to vector<16xi32>
    %75 = vector.shape_cast %74 : vector<16xi32> to vector<16x1xi32>
    %76 = tpu.iota {dimensions = array<i32: 1>} : vector<16x128xi32>
    %c0_i32 = arith.constant 0 : i32
    %77 = vector.broadcast %c0_i32 : i32 to vector<16x128xi32>
    %78 = arith.cmpi eq, %76, %77 : vector<16x128xi32>
    %79 = arith.sitofp %75 : vector<16x1xi32> to vector<16x1xf32>
    %80 = arith.mulf %79, %0 : vector<16x1xf32>
    %c1_i32 = arith.constant 1 : i32
    %81 = vector.broadcast %c1_i32 : i32 to vector<16x128xi32>
    %82 = arith.cmpi eq, %76, %81 : vector<16x128xi32>
    %83 = arith.mulf %68, %0 : vector<16x1xf32>
    %cst_33 = arith.constant 0.000000e+00 : f32
    %84 = vector.shape_cast %83 : vector<16x1xf32> to vector<16x1xf32>
    %85 = vector.broadcast %84 : vector<16x1xf32> to vector<16x128xf32>
    %86 = vector.broadcast %cst_33 : f32 to vector<16x128xf32>
    %87 = arith.select %82, %85, %86 : vector<16x128xi1>, vector<16x128xf32>
    %88 = vector.shape_cast %80 : vector<16x1xf32> to vector<16x1xf32>
    %89 = vector.broadcast %88 : vector<16x1xf32> to vector<16x128xf32>
    %90 = arith.select %78, %89, %87 : vector<16x128xi1>, vector<16x128xf32>
    %91 = vector.extract_strided_slice %55 {offsets = [0, 0], sizes = [16, 1280], strides = [1, 1]} : vector<16x1408xf32> to vector<16x1280xf32>
    %92 = vector.broadcast %0 : vector<16x1xf32> to vector<16x1280xf32>
    %93 = arith.mulf %91, %92 : vector<16x1280xf32>
    %c0_34 = arith.constant 0 : index
    %c0_35 = arith.constant 0 : index
    %94 = vector.load %arg7[%c0_34, %c0_35] : memref<16x1408xf32, #tpu.memory_space<vmem>>, vector<16x1280xf32>
    tpu.vector_store %arg7[%c0_34, %c0_35], %93 {strides = array<i32>} : memref<16x1408xf32, #tpu.memory_space<vmem>>, vector<16x1280xf32>,
    %c0_36 = arith.constant 0 : index
    %c1280 = arith.constant 1280 : index
    %95 = vector.load %arg7[%c0_36, %c1280] : memref<16x1408xf32, #tpu.memory_space<vmem>>, vector<16x128xf32>
    tpu.vector_store %arg7[%c0_36, %c1280], %90 {strides = array<i32>} : memref<16x1408xf32, #tpu.memory_space<vmem>>, vector<16x128xf32>,
    return
  }
  func.func @transform_0(%arg0: i32) -> (i32, i32) {
    %c0_i32 = arith.constant 0 : i32
    %c0_i32_0 = arith.constant 0 : i32
    %c0_i32_1 = arith.constant 0 : i32
    return %c0_i32, %c0_i32_0 : i32, i32
  }
  func.func @transform_1(%arg0: i32) -> (i32, i32) {
    %c0_i32 = arith.constant 0 : i32
    %c0_i32_0 = arith.constant 0 : i32
    %c0_i32_1 = arith.constant 0 : i32
    return %c0_i32, %c0_i32_0 : i32, i32
  }
  func.func @transform_2(%arg0: i32) -> (i32, i32) {
    %c0_i32 = arith.constant 0 : i32
    %c0_i32_0 = arith.constant 0 : i32
    %c0_i32_1 = arith.constant 0 : i32
    return %c0_i32, %c0_i32_0 : i32, i32
  }
  func.func @transform_3(%arg0: i32) -> (i32, i32) {
    %c0_i32 = arith.constant 0 : i32
    %c0_i32_0 = arith.constant 0 : i32
    %c0_i32_1 = arith.constant 0 : i32
    return %c0_i32, %c0_i32_0 : i32, i32
  }
  func.func @transform_4(%arg0: i32) -> (i32, i32) {
    %c0_i32 = arith.constant 0 : i32
    %c0_i32_0 = arith.constant 0 : i32
    %c0_i32_1 = arith.constant 0 : i32
    return %c0_i32, %c0_i32_0 : i32, i32
  }
  func.func @transform_5(%arg0: i32) -> (i32, i32) {
    %c0_i32 = arith.constant 0 : i32
    %c0_i32_0 = arith.constant 0 : i32
    %c0_i32_1 = arith.constant 0 : i32
    return %c0_i32, %c0_i32_0 : i32, i32
  }
  func.func @transform_6(%arg0: i32) -> (i32, i32) {
    %c0_i32 = arith.constant 0 : i32
    %c0_i32_0 = arith.constant 0 : i32
    %c0_i32_1 = arith.constant 0 : i32
    return %c0_i32, %c0_i32_0 : i32, i32
  }
}

</mosaic_0001>

<llo_original>
// kernel: _pallas_forward.1
$region0: #{_pallas_forward.1}
  #allocation0 [shape = 'u32[]', space=smem, size = 0x4, offset = 0x4, fixed_abs, tag = 'smem constant byte address 0x4 - core index']
  #allocation1 [shape = 'u32[144,128]{1,0:T(1,128)}', space=vmem, size = 0x12000, scoped, tag = 'internal scratch']
  %s0 = inlined_call_operand.vmem [shape: s32[16,1], index: 0, kind: input, shape index: {}]
  %s1 = inlined_call_operand.vmem [shape: f32[16,1], index: 1, kind: input, shape index: {}]
  %s2 = inlined_call_operand.vmem [shape: f32[16,16], index: 2, kind: input, shape index: {}]
  %s3 = inlined_call_operand.hbm [shape: bf16[128,2304], index: 3, kind: input, shape index: {}]
  %s4 = inlined_call_operand.hbm [shape: bf16[256,1408], index: 4, kind: input, shape index: {}]
  %s5 = inlined_call_operand.vmem [shape: f32[1,1792], index: 5, kind: input, shape index: {}]
  %s6 = inlined_call_operand.hbm [shape: f32[16,1408], index: 6, kind: output, shape index: {}]
  %s7 = sld [smem:[#allocation0]]
  $region42: #{_pallas_forward.1} parent=0
    _
  %s9 = ssub.s32 1, %s7
  %s10 = scalar_select 0, %s9, %s7
  $region1: #{_pallas_forward.1} parent=0
    #allocation2 [shape = 'u8[589824]{0}', space=vmem, size = 0x90000, scoped, tag = 'input window, operand 3, single buffered']
    #allocation3 [shape = 's32[1]{0}', space=sflag, size = 0x4, scoped, tag = 'scoped memory for _pallas_forward.1']
    #allocation4 [shape = 's32[1]{0}', space=sflag, size = 0x4, scoped, tag = 'scoped memory for _pallas_forward.1']
    #allocation5 [shape = 'u8[720896]{0}', space=vmem, size = 0xb0000, scoped, tag = 'input window, operand 4, single buffered']
    #allocation6 [shape = 's32[1]{0}', space=sflag, size = 0x4, scoped, tag = 'scoped memory for _pallas_forward.1']
    #allocation7 [shape = 'u8[90112]{0}', space=vmem, size = 0x16000, scoped, tag = 'output window, operand 0, single buffered']
    %11 = vsyncpa [#allocation3], 0
    %12 = vsyncpa [#allocation6], 0
    %13 = vsyncpa [#allocation4], 0
    // Predicated region
    $region2: #{_pallas_forward.1} parent=1 // pred_check
      _
    $region3: #{_pallas_forward.1} parent=1 // pred_check_branch
      %15 = sbr.rel (0) target = $region5
    $region4: #{_pallas_forward.1} parent=1 // pred_region
      _
    $region5: #{_pallas_forward.1} parent=1 // pred_fallthru
      _
    // Predicated region
    $region6: #{_pallas_forward.1} parent=1 // pred_check
      _
    $region7: #{_pallas_forward.1} parent=1 // pred_check_branch
      %17 = sbr.rel (0) target = $region9
    $region8: #{_pallas_forward.1} parent=1 // pred_region
      _
    $region9: #{_pallas_forward.1} parent=1 // pred_fallthru
      _
    // Predicated region
    $region10: #{_pallas_forward.1} parent=1 // pred_check
      _
    $region11: #{_pallas_forward.1} parent=1 // pred_check_branch
      %19 = sbr.rel (0) target = $region13
    $region12: #{_pallas_forward.1} parent=1 // pred_region
      _
    $region13: #{_pallas_forward.1} parent=1 // pred_fallthru
      _
    // Predicated region
    $region14: #{_pallas_forward.1} parent=1 // pred_check
      _
    $region15: #{_pallas_forward.1} parent=1 // pred_check_branch
      %21 = sbr.rel (0) target = $region17
    $region16: #{_pallas_forward.1} parent=1 // pred_region
      %s23 = ssub.s32 18432, 18432
      %24 = vsyncadd [#allocation3], %s23
      %s25 = sshll.u32 [#allocation2], 4
      %s26 = int_to_ptr.vmem [resolvable:$true] %s25
      %31 = dma.hbm_to_vmem [thread:$0]  %s3, 18432, %s26, [#allocation3], 1152, 1152, 72
    $region17: #{_pallas_forward.1} parent=1 // pred_fallthru
      _
    // Predicated region
    $region18: #{_pallas_forward.1} parent=1 // pred_check
      _
    $region19: #{_pallas_forward.1} parent=1 // pred_check_branch
      %33 = sbr.rel (0) target = $region21
    $region20: #{_pallas_forward.1} parent=1 // pred_region
      %s35 = ssub.s32 22528, 22528
      %36 = vsyncadd [#allocation6], %s35
      %s37 = sshll.u32 [#allocation5], 4
      %s38 = int_to_ptr.vmem [resolvable:$true] %s37
      %43 = dma.hbm_to_vmem [thread:$0]  %s4, 22528, %s38, [#allocation6], 704, 704, 44
    $region21: #{_pallas_forward.1} parent=1 // pred_fallthru
      _
    // Predicated region
    $region22: #{_pallas_forward.1} parent=1 // pred_check
      _
    $region23: #{_pallas_forward.1} parent=1 // pred_check_branch
      %45 = sbr.rel (0) target = $region25
    $region24: #{_pallas_forward.1} parent=1 // pred_region
      _
    $region25: #{_pallas_forward.1} parent=1 // pred_fallthru
      _
    // Predicated region
    $region26: #{_pallas_forward.1} parent=1 // pred_check
      _
    $region27: #{_pallas_forward.1} parent=1 // pred_check_branch
      %47 = sbr.rel (0) target = $region29
    $region28: #{_pallas_forward.1} parent=1 // pred_region
      %48 = dma.done [#allocation3], 18432
    $region29: #{_pallas_forward.1} parent=1 // pred_fallthru
      _
    // Predicated region
    $region30: #{_pallas_forward.1} parent=1 // pred_check
      _
    $region31: #{_pallas_forward.1} parent=1 // pred_check_branch
      %50 = sbr.rel (0) target = $region33
    $region32: #{_pallas_forward.1} parent=1 // pred_region
      %51 = dma.done [#allocation6], 22528
    $region33: #{_pallas_forward.1} parent=1 // pred_fallthru
      _
    %v53 = vld [vmem:[%s1] sm:$0xff]
    %v54 = vld [vmem:[%s1 + $0x8] sm:$0xff]
    %v55 = vld [vmem:[%s2] sm:$0xff]
    %v56 = vld [vmem:[%s2 + $0x8] sm:$0xff]
    %v57 = vld [vmem:[%s0] sm:$0xff]
    %v58 = vld [vmem:[%s0 + $0x8] sm:$0xff]
    %v59 = vlaneseq
    %v60 = vand.u32 %v59, 127
    %61 = vset.pattern.permute.xlu0 0
    %62 = vperm.xlu0 %61, %v57
    %v63 = vpop.permute.xlu0 %62
    %64 = vset.pattern.permute.xlu0 0
    %65 = vperm.xlu0 %64, %v58
    %v66 = vpop.permute.xlu0 %65
    %vm67 = vcmp.eq.s32.totalorder %v60, %v63
    %vm68 = vcmp.eq.s32.totalorder %v60, %v66
    %v69 = vsel %vm67, 1, 0
    %v70 = vsel %vm68, 1, 0
    %v71 = vcvt.s32.f32 %v69
    %v72 = vcvt.s32.f32 %v70
    %v73 = vpack.c.bf16 %v72, %v71
    %v74 = vld [vmem:[#allocation2] sm:$0xf]
    %v75 = vld [vmem:[#allocation2 + $0x48] sm:$0xf]
    %v76 = vld [vmem:[#allocation2 + $0x90] sm:$0xf]
    %v77 = vld [vmem:[#allocation2 + $0xd8] sm:$0xf]
    %v78 = vld [vmem:[#allocation2 + $0x120] sm:$0xf]
    %v79 = vld [vmem:[#allocation2 + $0x168] sm:$0xf]
    %v80 = vld [vmem:[#allocation2 + $0x1b0] sm:$0xf]
    %v81 = vld [vmem:[#allocation2 + $0x1f8] sm:$0xf]
    %v82 = vld [vmem:[#allocation2 + $0x240] sm:$0xf]
    %v83 = vld [vmem:[#allocation2 + $0x288] sm:$0xf]
    %v84 = vld [vmem:[#allocation2 + $0x2d0] sm:$0xf]
    %v85 = vld [vmem:[#allocation2 + $0x318] sm:$0xf]
    %v86 = vld [vmem:[#allocation2 + $0x360] sm:$0xf]
    %v87 = vld [vmem:[#allocation2 + $0x3a8] sm:$0xf]
    %v88 = vld [vmem:[#allocation2 + $0x3f0] sm:$0xf]
    %v89 = vld [vmem:[#allocation2 + $0x438] sm:$0xf]
    %v106 = vunpack.c.l.b16 %v74
    %v107 = vunpack.c.l.b16 %v75
    %v108 = vunpack.c.l.b16 %v76
    %v109 = vunpack.c.l.b16 %v77
    %v110 = vunpack.c.l.b16 %v78
    %v111 = vunpack.c.l.b16 %v79
    %v112 = vunpack.c.l.b16 %v80
    %v113 = vunpack.c.l.b16 %v81
    %v114 = vunpack.c.l.b16 %v82
    %v115 = vunpack.c.l.b16 %v83
    %v116 = vunpack.c.l.b16 %v84
    %v117 = vunpack.c.l.b16 %v85
    %v118 = vunpack.c.l.b16 %v86
    %v119 = vunpack.c.l.b16 %v87
    %v120 = vunpack.c.l.b16 %v88
    %v121 = vunpack.c.l.b16 %v89
    %v122 = vpack.c.b16 %v107, %v106
    %v123 = vpack.c.b16 %v109, %v108
    %v124 = vpack.c.b16 %v111, %v110
    %v125 = vpack.c.b16 %v113, %v112
    %v126 = vpack.c.b16 %v115, %v114
    %v127 = vpack.c.b16 %v117, %v116
    %v128 = vpack.c.b16 %v119, %v118
    %v129 = vpack.c.b16 %v121, %v120
    %138 = vmatprep.subr.bf16.mxu0 0
    %139 = vmatpush1.bf16.msra.mxu0 %v122
    %140 = vmatprep.subr.bf16.mxu0 0
    %141 = vmatpush1.bf16.msra.mxu0 %v123
    %142 = vmatprep.subr.bf16.mxu0 0
    %143 = vmatpush1.bf16.msra.mxu0 %v124
    %144 = vmatprep.subr.bf16.mxu0 0
    %145 = vmatpush1.bf16.msra.mxu0 %v125
    %146 = vmatprep.subr.bf16.mxu0 0
    %147 = vmatpush1.bf16.msra.mxu0 %v126
    %148 = vmatprep.subr.bf16.mxu0 0
    %149 = vmatpush1.bf16.msra.mxu0 %v127
    %150 = vmatprep.subr.bf16.mxu0 0
    %151 = vmatpush1.bf16.msra.mxu0 %v128
    %152 = vmatprep.subr.bf16.mxu0 0
    %153 = vmatpush1.bf16.msra.mxu0 %v129
    %154 = vmatprep.subr.bf16.mxu0 0
    %155 = vmatpush1.bf16.msra.mxu0 0
    %156 = vmatprep.subr.bf16.mxu0 0
    %157 = vmatpush1.bf16.msra.mxu0 0
    %158 = vmatprep.subr.bf16.mxu0 0
    %159 = vmatpush1.bf16.msra.mxu0 0
    %160 = vmatprep.subr.bf16.mxu0 0
    %161 = vmatpush1.bf16.msra.mxu0 0
    %162 = vmatprep.subr.bf16.mxu0 0
    %163 = vmatpush1.bf16.msra.mxu0 0
    %164 = vmatprep.subr.bf16.mxu0 0
    %165 = vmatpush1.bf16.msra.mxu0 0
    %166 = vmatprep.subr.bf16.mxu0 0
    %167 = vmatpush1.bf16.msra.mxu0 0
    %168 = vmatprep.subr.bf16.mxu0 0
    %169 = vmatpush1.bf16.msra.mxu0 0
    %170 = vmatprep.mubr.bf16.mxu0 0
    %171 = vmatmul.mubr.bf16.gmra.mrb[0].mxu0 %v73
    %v172 = vpop.f32.mrb[0].mxu0
    %v173 = vadd.f32 0.0, %v172
    %v174 = vpop.f32.mrb[0].mxu0
    %v175 = vpop.f32.mrb[0].mxu0
    %v176 = vadd.f32 0.0, %v175
    %v177 = vpop.f32.mrb[0].mxu0
    %178 = vdwg.mxu0
    %v179 = vpack.c.bf16 %v176, %v173
    %v180 = vld [vmem:[#allocation2 + $0x4] sm:$0xff]
    %v181 = vld [vmem:[#allocation2 + $0xc] sm:$0xf]
    %v182 = vld [vmem:[#allocation2 + $0x4c] sm:$0xff]
    %v183 = vld [vmem:[#allocation2 + $0x54] sm:$0xf]
    %v184 = vld [vmem:[#allocation2 + $0x94] sm:$0xff]
    %v185 = vld [vmem:[#allocation2 + $0x9c] sm:$0xf]
    %v186 = vld [vmem:[#allocation2 + $0xdc] sm:$0xff]
    %v187 = vld [vmem:[#allocation2 + $0xe4] sm:$0xf]
    %v188 = vld [vmem:[#allocation2 + $0x124] sm:$0xff]
    %v189 = vld [vmem:[#allocation2 + $0x12c] sm:$0xf]
    %v190 = vld [vmem:[#allocation2 + $0x16c] sm:$0xff]
    %v191 = vld [vmem:[#allocation2 + $0x174] sm:$0xf]
    %v192 = vld [vmem:[#allocation2 + $0x1b4] sm:$0xff]
    %v193 = vld [vmem:[#allocation2 + $0x1bc] sm:$0xf]
    %v194 = vld [vmem:[#allocation2 + $0x1fc] sm:$0xff]
    %v195 = vld [vmem:[#allocation2 + $0x204] sm:$0xf]
    %v196 = vld [vmem:[#allocation2 + $0x244] sm:$0xff]
    %v197 = vld [vmem:[#allocation2 + $0x24c] sm:$0xf]
    %v198 = vld [vmem:[#allocation2 + $0x28c] sm:$0xff]
    %v199 = vld [vmem:[#allocation2 + $0x294] sm:$0xf]
    %v200 = vld [vmem:[#allocation2 + $0x2d4] sm:$0xff]
    %v201 = vld [vmem:[#allocation2 + $0x2dc] sm:$0xf]
    %v202 = vld [vmem:[#allocation2 + $0x31c] sm:$0xff]
    %v203 = vld [vmem:[#allocation2 + $0x324] sm:$0xf]
    %v204 = vld [vmem:[#allocation2 + $0x364] sm:$0xff]
    %v205 = vld [vmem:[#allocation2 + $0x36c] sm:$0xf]
    %v206 = vld [vmem:[#allocation2 + $0x3ac] sm:$0xff]
    %v207 = vld [vmem:[#allocation2 + $0x3b4] sm:$0xf]
    %v208 = vld [vmem:[#allocation2 + $0x3f4] sm:$0xff]
    %v209 = vld [vmem:[#allocation2 + $0x3fc] sm:$0xf]
    %v210 = vld [vmem:[#allocation2 + $0x43c] sm:$0xff]
    %v211 = vld [vmem:[#allocation2 + $0x444] sm:$0xf]
    %v244 = vunpack.c.l.b16 %v180
    %v245 = vunpack.c.h.b16 %v180
    %v246 = vunpack.c.l.b16 %v181
    %v247 = vunpack.c.l.b16 %v182
    %v248 = vunpack.c.h.b16 %v182
    %v249 = vunpack.c.l.b16 %v183
    %v250 = vunpack.c.l.b16 %v184
    %v251 = vunpack.c.h.b16 %v184
    %v252 = vunpack.c.l.b16 %v185
    %v253 = vunpack.c.l.b16 %v186
    %v254 = vunpack.c.h.b16 %v186
    %v255 = vunpack.c.l.b16 %v187
    %v256 = vunpack.c.l.b16 %v188
    %v257 = vunpack.c.h.b16 %v188
    %v258 = vunpack.c.l.b16 %v189
    %v259 = vunpack.c.l.b16 %v190
    %v260 = vunpack.c.h.b16 %v190
    %v261 = vunpack.c.l.b16 %v191
    %v262 = vunpack.c.l.b16 %v192
    %v263 = vunpack.c.h.b16 %v192
    %v264 = vunpack.c.l.b16 %v193
    %v265 = vunpack.c.l.b16 %v194
    %v266 = vunpack.c.h.b16 %v194
    %v267 = vunpack.c.l.b16 %v195
    %v268 = vunpack.c.l.b16 %v196
    %v269 = vunpack.c.h.b16 %v196
    %v270 = vunpack.c.l.b16 %v197
    %v271 = vunpack.c.l.b16 %v198
    %v272 = vunpack.c.h.b16 %v198
    %v273 = vunpack.c.l.b16 %v199
    %v274 = vunpack.c.l.b16 %v200
    %v275 = vunpack.c.h.b16 %v200
    %v276 = vunpack.c.l.b16 %v201
    %v277 = vunpack.c.l.b16 %v202
    %v278 = vunpack.c.h.b16 %v202
    %v279 = vunpack.c.l.b16 %v203
    %v280 = vunpack.c.l.b16 %v204
    %v281 = vunpack.c.h.b16 %v204
    %v282 = vunpack.c.l.b16 %v205
    %v283 = vunpack.c.l.b16 %v206
    %v284 = vunpack.c.h.b16 %v206
    %v285 = vunpack.c.l.b16 %v207
    %v286 = vunpack.c.l.b16 %v208
    %v287 = vunpack.c.h.b16 %v208
    %v288 = vunpack.c.l.b16 %v209
    %v289 = vunpack.c.l.b16 %v210
    %v290 = vunpack.c.h.b16 %v210
    %v291 = vunpack.c.l.b16 %v211
    %v292 = vpack.c.b16 %v247, %v244
    %v293 = vpack.c.b16 %v248, %v245
    %v294 = vpack.c.b16 %v249, %v246
    %v295 = vpack.c.b16 %v253, %v250
    %v296 = vpack.c.b16 %v254, %v251
    %v297 = vpack.c.b16 %v255, %v252
    %v298 = vpack.c.b16 %v259, %v256
    %v299 = vpack.c.b16 %v260, %v257
    %v300 = vpack.c.b16 %v261, %v258
    %v301 = vpack.c.b16 %v265, %v262
    %v302 = vpack.c.b16 %v266, %v263
    %v303 = vpack.c.b16 %v267, %v264
    %v304 = vpack.c.b16 %v271, %v268
    %v305 = vpack.c.b16 %v272, %v269
    %v306 = vpack.c.b16 %v273, %v270
    %v307 = vpack.c.b16 %v277, %v274
    %v308 = vpack.c.b16 %v278, %v275
    %v309 = vpack.c.b16 %v279, %v276
    %v310 = vpack.c.b16 %v283, %v280
    %v311 = vpack.c.b16 %v284, %v281
    %v312 = vpack.c.b16 %v285, %v282
    %v313 = vpack.c.b16 %v289, %v286
    %v314 = vpack.c.b16 %v290, %v287
    %v315 = vpack.c.b16 %v291, %v288
    %340 = vmatprep.subr.bf16.mxu0 %v293
    %341 = vmatpush1.bf16.msra.mxu0 %v292
    %342 = vmatprep.subr.bf16.mxu0 %v296
    %343 = vmatpush1.bf16.msra.mxu0 %v295
    %344 = vmatprep.subr.bf16.mxu0 %v299
    %345 = vmatpush1.bf16.msra.mxu0 %v298
    %346 = vmatprep.subr.bf16.mxu0 %v302
    %347 = vmatpush1.bf16.msra.mxu0 %v301
    %348 = vmatprep.subr.bf16.mxu0 %v305
    %349 = vmatpush1.bf16.msra.mxu0 %v304
    %350 = vmatprep.subr.bf16.mxu0 %v308
    %351 = vmatpush1.bf16.msra.mxu0 %v307
    %352 = vmatprep.subr.bf16.mxu0 %v311
    %353 = vmatpush1.bf16.msra.mxu0 %v310
    %354 = vmatprep.subr.bf16.mxu0 %v314
    %355 = vmatpush1.bf16.msra.mxu0 %v313
    %356 = vmatprep.subr.bf16.mxu0 0
    %357 = vmatpush1.bf16.msra.mxu0 0
    %358 = vmatprep.subr.bf16.mxu0 0
    %359 = vmatpush1.bf16.msra.mxu0 0
    %360 = vmatprep.subr.bf16.mxu0 0
    %361 = vmatpush1.bf16.msra.mxu0 0
    %362 = vmatprep.subr.bf16.mxu0 0
    %363 = vmatpush1.bf16.msra.mxu0 0
    %364 = vmatprep.subr.bf16.mxu0 0
    %365 = vmatpush1.bf16.msra.mxu0 0
    %366 = vmatprep.subr.bf16.mxu0 0
    %367 = vmatpush1.bf16.msra.mxu0 0
    %368 = vmatprep.subr.bf16.mxu0 0
    %369 = vmatpush1.bf16.msra.mxu0 0
    %370 = vmatprep.subr.bf16.mxu0 0
    %371 = vmatpush1.bf16.msra.mxu0 0
    %372 = vmatprep.mubr.bf16.mxu0 0
    %373 = vmatmul.mubr.bf16.gmra.mrb[0].mxu0 %v179
    %v374 = vpop.f32.mrb[0].mxu0
    %v375 = vadd.f32 0.0, %v374
    %v376 = vpop.f32.mrb[0].mxu0
    %v377 = vadd.f32 0.0, %v376
    %v378 = vpop.f32.mrb[0].mxu0
    %v379 = vadd.f32 0.0, %v378
    %v380 = vpop.f32.mrb[0].mxu0
    %v381 = vadd.f32 0.0, %v380
    %382 = vdwg.mxu0
    %383 = vmatprep.subr.bf16.mxu0 0
    %384 = vmatpush1.bf16.msra.mxu0 %v294
    %385 = vmatprep.subr.bf16.mxu0 0
    %386 = vmatpush1.bf16.msra.mxu0 %v297
    %387 = vmatprep.subr.bf16.mxu0 0
    %388 = vmatpush1.bf16.msra.mxu0 %v300
    %389 = vmatprep.subr.bf16.mxu0 0
    %390 = vmatpush1.bf16.msra.mxu0 %v303
    %391 = vmatprep.subr.bf16.mxu0 0
    %392 = vmatpush1.bf16.msra.mxu0 %v306
    %393 = vmatprep.subr.bf16.mxu0 0
    %394 = vmatpush1.bf16.msra.mxu0 %v309
    %395 = vmatprep.subr.bf16.mxu0 0
    %396 = vmatpush1.bf16.msra.mxu0 %v312
    %397 = vmatprep.subr.bf16.mxu0 0
    %398 = vmatpush1.bf16.msra.mxu0 %v315
    %399 = vmatprep.subr.bf16.mxu0 0
    %400 = vmatpush1.bf16.msra.mxu0 0
    %401 = vmatprep.subr.bf16.mxu0 0
    %402 = vmatpush1.bf16.msra.mxu0 0
    %403 = vmatprep.subr.bf16.mxu0 0
    %404 = vmatpush1.bf16.msra.mxu0 0
    %405 = vmatprep.subr.bf16.mxu0 0
    %406 = vmatpush1.bf16.msra.mxu0 0
    %407 = vmatprep.subr.bf16.mxu0 0
    %408 = vmatpush1.bf16.msra.mxu0 0
    %409 = vmatprep.subr.bf16.mxu0 0
    %410 = vmatpush1.bf16.msra.mxu0 0
    %411 = vmatprep.subr.bf16.mxu0 0
    %412 = vmatpush1.bf16.msra.mxu0 0
    %413 = vmatprep.subr.bf16.mxu0 0
    %414 = vmatpush1.bf16.msra.mxu0 0
    %415 = vmatprep.mubr.bf16.mxu0 0
    %416 = vmatmul.mubr.bf16.gmra.mrb[0].mxu0 %v179
    %v417 = vpop.f32.mrb[0].mxu0
    %v418 = vadd.f32 0.0, %v417
    %v419 = vpop.f32.mrb[0].mxu0
    %v420 = vpop.f32.mrb[0].mxu0
    %v421 = vadd.f32 0.0, %v420
    %v422 = vpop.f32.mrb[0].mxu0
    %423 = vdwg.mxu0
    %424 = vmatprep.subr.mxu0 0.0
    %425 = vmatpush1.xpose.msra.mxu0 %v377
    %426 = vmatprep.subr.mxu0 0.0
    %427 = vmatpush1.xpose.msra.mxu0 %v381
    %428 = vmatprep.subr.mxu0 0.0
    %429 = vmatpush1.xpose.msra.mxu0 0.0
    %430 = vmatprep.subr.mxu0 0.0
    %431 = vmatpush1.xpose.msra.mxu0 0.0
    %432 = vmatprep.subr.mxu0 0.0
    %433 = vmatpush1.xpose.msra.mxu0 0.0
    %434 = vmatprep.subr.mxu0 0.0
    %435 = vmatpush1.xpose.msra.mxu0 0.0
    %436 = vmatprep.subr.mxu0 0.0
    %437 = vmatpush1.xpose.msra.mxu0 0.0
    %438 = vmatprep.subr.mxu0 0.0
    %439 = vmatpush1.xpose.msra.mxu0 0.0
    %440 = vmatprep.subr.mxu0 0.0
    %441 = vmatpush1.xpose.msra.mxu0 0.0
    %442 = vmatprep.subr.mxu0 0.0
    %443 = vmatpush1.xpose.msra.mxu0 0.0
    %444 = vmatprep.subr.mxu0 0.0
    %445 = vmatpush1.xpose.msra.mxu0 0.0
    %446 = vmatprep.subr.mxu0 0.0
    %447 = vmatpush1.xpose.msra.mxu0 0.0
    %448 = vmatprep.subr.mxu0 0.0
    %449 = vmatpush1.xpose.msra.mxu0 0.0
    %450 = vmatprep.subr.mxu0 0.0
    %451 = vmatpush1.xpose.msra.mxu0 0.0
    %452 = vmatprep.subr.mxu0 0.0
    %453 = vmatpush1.xpose.msra.mxu0 0.0
    %454 = vmatprep.subr.mxu0 0.0
    %455 = vmatpush1.xpose.msra.mxu0 0.0
    %456 = vmatprep.subr.mxu0 0.0
    %457 = vmatpush1.xpose.msra.mxu0 0.0
    %458 = vmatprep.subr.mxu0 0.0
    %459 = vmatpush1.xpose.msra.mxu0 0.0
    %460 = vmatprep.subr.mxu0 0.0
    %461 = vmatpush1.xpose.msra.mxu0 0.0
    %462 = vmatprep.subr.mxu0 0.0
    %463 = vmatpush1.xpose.msra.mxu0 0.0
    %464 = vmatprep.subr.mxu0 0.0
    %465 = vmatpush1.xpose.msra.mxu0 0.0
    %466 = vmatprep.subr.mxu0 0.0
    %467 = vmatpush1.xpose.msra.mxu0 0.0
    %468 = vmatprep.subr.mxu0 0.0
    %469 = vmatpush1.xpose.msra.mxu0 0.0
    %470 = vmatprep.subr.mxu0 0.0
    %471 = vmatpush1.xpose.msra.mxu0 0.0
    %472 = vmatprep.subr.mxu0 0.0
    %473 = vmatpush1.xpose.msra.mxu0 0.0
    %474 = vmatprep.subr.mxu0 0.0
    %475 = vmatpush1.xpose.msra.mxu0 0.0
    %476 = vmatprep.subr.mxu0 0.0
    %477 = vmatpush1.xpose.msra.mxu0 0.0
    %478 = vmatprep.subr.mxu0 0.0
    %479 = vmatpush1.xpose.msra.mxu0 0.0
    %480 = vmatprep.subr.mxu0 0.0
    %481 = vmatpush1.xpose.msra.mxu0 0.0
    %482 = vmatprep.subr.mxu0 0.0
    %483 = vmatpush1.xpose.msra.mxu0 0.0
    %484 = vmatprep.subr.mxu0 0.0
    %485 = vmatpush1.xpose.msra.mxu0 0.0
    %486 = vmatprep.subr.mxu0 0.0
    %487 = vmatpush1.xpose.msra.mxu0 0.0
    %488 = vmatprep.mubr.f32.mxu0 0.0
    %489 = vmatmul.mubr.f32.gmra.mrb[0].mxu0 %v375
    %v490 = vpop.f32.mrb[0].mxu0
    %v491 = vadd.f32 0.0, %v490
    %v492 = vpop.f32.mrb[0].mxu0
    %493 = vmatprep.mubr.f32.mxu0 0.0
    %494 = vmatmul.mubr.f32.gmra.mrb[0].mxu0 %v379
    %v495 = vpop.f32.mrb[0].mxu0
    %v496 = vadd.f32 0.0, %v495
    %v497 = vpop.f32.mrb[0].mxu0
    %498 = vdwg.mxu0
    %v499 = vmul.f32 %v491, 0.088388346
    %v500 = vmul.f32 %v496, 0.088388346
    %v501 = vadd.f32 %v499, %v55
    %v502 = vadd.f32 %v500, %v56
    %vm503 = vcmask 130048
    %v504 = vsel %vm503, %v501, -inf
    %505 = vmax.xlane.f32.xlu0 %v504
    %v506 = vpop.xlane.xlu0 %505
    %v507 = vsel %vm503, %v502, -inf
    %508 = vmax.xlane.f32.xlu0 %v507
    %v509 = vpop.xlane.xlu0 %508
    %v510 = vsub.f32 %v501, %v506
    %v511 = vsub.f32 %v502, %v509
    %v512 = vmul.f32 %v510, 1.442695
    %v513 = vpow.pop %v512
    %v514 = vmul.f32 %v511, 1.442695
    %v515 = vpow.pop %v514
    %v516 = vsel %vm503, %v513, 0.0
    %517 = vadd.xlane.f32.xlu0 %v516
    %v518 = vpop.xlane.xlu0 %517
    %v519 = vsel %vm503, %v515, 0.0
    %520 = vadd.xlane.f32.xlu0 %v519
    %v521 = vpop.xlane.xlu0 %520
    %v522 = vrcp.pop %v518
    %v523 = vrcp.pop %v521
    %v524 = vmul.f32 %v513, %v522
    %v525 = vmul.f32 %v515, %v523
    %v527 = vsel %vm503, %v524, 0
    %v530 = vsel %vm503, %v525, 0
    %532 = vmatprep.subr.mxu0 0.0
    %533 = vmatpush1.msra.mxu0 %v418
    %534 = vmatprep.subr.mxu0 0.0
    %535 = vmatpush1.msra.mxu0 %v421
    %536 = vmatprep.subr.mxu0 0.0
    %537 = vmatpush1.msra.mxu0 0.0
    %538 = vmatprep.subr.mxu0 0.0
    %539 = vmatpush1.msra.mxu0 0.0
    %540 = vmatprep.subr.mxu0 0.0
    %541 = vmatpush1.msra.mxu0 0.0
    %542 = vmatprep.subr.mxu0 0.0
    %543 = vmatpush1.msra.mxu0 0.0
    %544 = vmatprep.subr.mxu0 0.0
    %545 = vmatpush1.msra.mxu0 0.0
    %546 = vmatprep.subr.mxu0 0.0
    %547 = vmatpush1.msra.mxu0 0.0
    %548 = vmatprep.subr.mxu0 0.0
    %549 = vmatpush1.msra.mxu0 0.0
    %550 = vmatprep.subr.mxu0 0.0
    %551 = vmatpush1.msra.mxu0 0.0
    %552 = vmatprep.subr.mxu0 0.0
    %553 = vmatpush1.msra.mxu0 0.0
    %554 = vmatprep.subr.mxu0 0.0
    %555 = vmatpush1.msra.mxu0 0.0
    %556 = vmatprep.subr.mxu0 0.0
    %557 = vmatpush1.msra.mxu0 0.0
    %558 = vmatprep.subr.mxu0 0.0
    %559 = vmatpush1.msra.mxu0 0.0
    %560 = vmatprep.subr.mxu0 0.0
    %561 = vmatpush1.msra.mxu0 0.0
    %562 = vmatprep.subr.mxu0 0.0
    %563 = vmatpush1.msra.mxu0 0.0
    %564 = vmatprep.subr.mxu0 0.0
    %565 = vmatpush1.msra.mxu0 0.0
    %566 = vmatprep.subr.mxu0 0.0
    %567 = vmatpush1.msra.mxu0 0.0
    %568 = vmatprep.subr.mxu0 0.0
    %569 = vmatpush1.msra.mxu0 0.0
    %570 = vmatprep.subr.mxu0 0.0
    %571 = vmatpush1.msra.mxu0 0.0
    %572 = vmatprep.subr.mxu0 0.0
    %573 = vmatpush1.msra.mxu0 0.0
    %574 = vmatprep.subr.mxu0 0.0
    %575 = vmatpush1.msra.mxu0 0.0
    %576 = vmatprep.subr.mxu0 0.0
    %577 = vmatpush1.msra.mxu0 0.0
    %578 = vmatprep.subr.mxu0 0.0
    %579 = vmatpush1.msra.mxu0 0.0
    %580 = vmatprep.subr.mxu0 0.0
    %581 = vmatpush1.msra.mxu0 0.0
    %582 = vmatprep.subr.mxu0 0.0
    %583 = vmatpush1.msra.mxu0 0.0
    %584 = vmatprep.subr.mxu0 0.0
    %585 = vmatpush1.msra.mxu0 0.0
    %586 = vmatprep.subr.mxu0 0.0
    %587 = vmatpush1.msra.mxu0 0.0
    %588 = vmatprep.subr.mxu0 0.0
    %589 = vmatpush1.msra.mxu0 0.0
    %590 = vmatprep.subr.mxu0 0.0
    %591 = vmatpush1.msra.mxu0 0.0
    %592 = vmatprep.subr.mxu0 0.0
    %593 = vmatpush1.msra.mxu0 0.0
    %594 = vmatprep.subr.mxu0 0.0
    %595 = vmatpush1.msra.mxu0 0.0
    %596 = vmatprep.mubr.f32.mxu0 0.0
    %597 = vmatmul.mubr.f32.gmra.mrb[0].mxu0 %v527
    %v598 = vpop.f32.mrb[0].mxu0
    %v599 = vadd.f32 0.0, %v598
    %v600 = vpop.f32.mrb[0].mxu0
    %601 = vmatprep.mubr.f32.mxu0 0.0
    %602 = vmatmul.mubr.f32.gmra.mrb[0].mxu0 %v530
    %v603 = vpop.f32.mrb[0].mxu0
    %v604 = vadd.f32 0.0, %v603
    %v605 = vpop.f32.mrb[0].mxu0
    %606 = vdwg.mxu0
    %v607 = vpack.c.bf16 %v604, %v599
    %v608 = vld [vmem:[#allocation2 + $0x10] sm:$0xf]
    %v609 = vld [vmem:[#allocation2 + $0x58] sm:$0xf]
    %v610 = vld [vmem:[#allocation2 + $0xa0] sm:$0xf]
    %v611 = vld [vmem:[#allocation2 + $0xe8] sm:$0xf]
    %v612 = vld [vmem:[#allocation2 + $0x130] sm:$0xf]
    %v613 = vld [vmem:[#allocation2 + $0x178] sm:$0xf]
    %v614 = vld [vmem:[#allocation2 + $0x1c0] sm:$0xf]
    %v615 = vld [vmem:[#allocation2 + $0x208] sm:$0xf]
    %v616 = vld [vmem:[#allocation2 + $0x250] sm:$0xf]
    %v617 = vld [vmem:[#allocation2 + $0x298] sm:$0xf]
    %v618 = vld [vmem:[#allocation2 + $0x2e0] sm:$0xf]
    %v619 = vld [vmem:[#allocation2 + $0x328] sm:$0xf]
    %v620 = vld [vmem:[#allocation2 + $0x370] sm:$0xf]
    %v621 = vld [vmem:[#allocation2 + $0x3b8] sm:$0xf]
    %v622 = vld [vmem:[#allocation2 + $0x400] sm:$0xf]
    %v623 = vld [vmem:[#allocation2 + $0x448] sm:$0xf]
    %v640 = vunpack.c.l.b16 %v608
    %v641 = vunpack.c.l.b16 %v609
    %v642 = vunpack.c.l.b16 %v610
    %v643 = vunpack.c.l.b16 %v611
    %v644 = vunpack.c.l.b16 %v612
    %v645 = vunpack.c.l.b16 %v613
    %v646 = vunpack.c.l.b16 %v614
    %v647 = vunpack.c.l.b16 %v615
    %v648 = vunpack.c.l.b16 %v616
    %v649 = vunpack.c.l.b16 %v617
    %v650 = vunpack.c.l.b16 %v618
    %v651 = vunpack.c.l.b16 %v619
    %v652 = vunpack.c.l.b16 %v620
    %v653 = vunpack.c.l.b16 %v621
    %v654 = vunpack.c.l.b16 %v622
    %v655 = vunpack.c.l.b16 %v623
    %v656 = vpack.c.b16 %v641, %v640
    %v657 = vpack.c.b16 %v643, %v642
    %v658 = vpack.c.b16 %v645, %v644
    %v659 = vpack.c.b16 %v647, %v646
    %v660 = vpack.c.b16 %v649, %v648
    %v661 = vpack.c.b16 %v651, %v650
    %v662 = vpack.c.b16 %v653, %v652
    %v663 = vpack.c.b16 %v655, %v654
    %672 = vmatprep.subr.bf16.mxu0 0
    %673 = vmatpush1.bf16.msra.mxu0 %v656
    %674 = vmatprep.subr.bf16.mxu0 0
    %675 = vmatpush1.bf16.msra.mxu0 %v657
    %676 = vmatprep.subr.bf16.mxu0 0
    %677 = vmatpush1.bf16.msra.mxu0 %v658
    %678 = vmatprep.subr.bf16.mxu0 0
    %679 = vmatpush1.bf16.msra.mxu0 %v659
    %680 = vmatprep.subr.bf16.mxu0 0
    %681 = vmatpush1.bf16.msra.mxu0 %v660
    %682 = vmatprep.subr.bf16.mxu0 0
    %683 = vmatpush1.bf16.msra.mxu0 %v661
    %684 = vmatprep.subr.bf16.mxu0 0
    %685 = vmatpush1.bf16.msra.mxu0 %v662
    %686 = vmatprep.subr.bf16.mxu0 0
    %687 = vmatpush1.bf16.msra.mxu0 %v663
    %688 = vmatprep.subr.bf16.mxu0 0
    %689 = vmatpush1.bf16.msra.mxu0 0
    %690 = vmatprep.subr.bf16.mxu0 0
    %691 = vmatpush1.bf16.msra.mxu0 0
    %692 = vmatprep.subr.bf16.mxu0 0
    %693 = vmatpush1.bf16.msra.mxu0 0
    %694 = vmatprep.subr.bf16.mxu0 0
    %695 = vmatpush1.bf16.msra.mxu0 0
    %696 = vmatprep.subr.bf16.mxu0 0
    %697 = vmatpush1.bf16.msra.mxu0 0
    %698 = vmatprep.subr.bf16.mxu0 0
    %699 = vmatpush1.bf16.msra.mxu0 0
    %700 = vmatprep.subr.bf16.mxu0 0
    %701 = vmatpush1.bf16.msra.mxu0 0
    %702 = vmatprep.subr.bf16.mxu0 0
    %703 = vmatpush1.bf16.msra.mxu0 0
    %704 = vmatprep.mubr.bf16.mxu0 0
    %705 = vmatmul.mubr.bf16.gmra.mrb[0].mxu0 %v607
    %v706 = vpop.f32.mrb[0].mxu0
    %v707 = vadd.f32 %v173, %v706
    %v708 = vpop.f32.mrb[0].mxu0
    %v709 = vpop.f32.mrb[0].mxu0
    %v710 = vadd.f32 %v176, %v709
    %v711 = vpop.f32.mrb[0].mxu0
    %712 = vdwg.mxu0
    %v713 = vld [vmem:[%s5] sm:$0x3]
    %v714 = vpack.c.bf16 %v710, %v707
    %v715 = vld [vmem:[#allocation2 + $0x14] sm:$0xff]
    %v716 = vld [vmem:[#allocation2 + $0x5c] sm:$0xff]
    %v717 = vld [vmem:[#allocation2 + $0xa4] sm:$0xff]
    %v718 = vld [vmem:[#allocation2 + $0xec] sm:$0xff]
    %v719 = vld [vmem:[#allocation2 + $0x134] sm:$0xff]
    %v720 = vld [vmem:[#allocation2 + $0x17c] sm:$0xff]
    %v721 = vld [vmem:[#allocation2 + $0x1c4] sm:$0xff]
    %v722 = vld [vmem:[#allocation2 + $0x20c] sm:$0xff]
    %v723 = vld [vmem:[#allocation2 + $0x254] sm:$0xff]
    %v724 = vld [vmem:[#allocation2 + $0x29c] sm:$0xff]
    %v725 = vld [vmem:[#allocation2 + $0x2e4] sm:$0xff]
    %v726 = vld [vmem:[#allocation2 + $0x32c] sm:$0xff]
    %v727 = vld [vmem:[#allocation2 + $0x374] sm:$0xff]
    %v728 = vld [vmem:[#allocation2 + $0x3bc] sm:$0xff]
    %v729 = vld [vmem:[#allocation2 + $0x404] sm:$0xff]
    %v730 = vld [vmem:[#allocation2 + $0x44c] sm:$0xff]
    %v732 = vlaneseq
    %v733 = vshrl.u32 %v732, 7
    %v734 = vsub.s32 0, %v733
    %v735 = vrot.slane %v713, %v734
    %v736 = vlaneseq
    %v737 = vshrl.u32 %v736, 7
    %v738 = vsub.s32 1, %v737
    %v739 = vrot.slane %v713, %v738
    %v758 = vunpack.c.l.b16 %v715
    %v759 = vunpack.c.h.b16 %v715
    %v760 = vunpack.c.l.b16 %v716
    %v761 = vunpack.c.h.b16 %v716
    %v762 = vunpack.c.l.b16 %v717
    %v763 = vunpack.c.h.b16 %v717
    %v764 = vunpack.c.l.b16 %v718
    %v765 = vunpack.c.h.b16 %v718
    %v766 = vunpack.c.l.b16 %v719
    %v767 = vunpack.c.h.b16 %v719
    %v768 = vunpack.c.l.b16 %v720
    %v769 = vunpack.c.h.b16 %v720
    %v770 = vunpack.c.l.b16 %v721
    %v771 = vunpack.c.h.b16 %v721
    %v772 = vunpack.c.l.b16 %v722
    %v773 = vunpack.c.h.b16 %v722
    %v774 = vunpack.c.l.b16 %v723
    %v775 = vunpack.c.h.b16 %v723
    %v776 = vunpack.c.l.b16 %v724
    %v777 = vunpack.c.h.b16 %v724
    %v778 = vunpack.c.l.b16 %v725
    %v779 = vunpack.c.h.b16 %v725
    %v780 = vunpack.c.l.b16 %v726
    %v781 = vunpack.c.h.b16 %v726
    %v782 = vunpack.c.l.b16 %v727
    %v783 = vunpack.c.h.b16 %v727
    %v784 = vunpack.c.l.b16 %v728
    %v785 = vunpack.c.h.b16 %v728
    %v786 = vunpack.c.l.b16 %v729
    %v787 = vunpack.c.h.b16 %v729
    %v788 = vunpack.c.l.b16 %v730
    %v789 = vunpack.c.h.b16 %v730
    %v790 = vpack.c.b16 %v760, %v758
    %v791 = vpack.c.b16 %v761, %v759
    %v792 = vpack.c.b16 %v764, %v762
    %v793 = vpack.c.b16 %v765, %v763
    %v794 = vpack.c.b16 %v768, %v766
    %v795 = vpack.c.b16 %v769, %v767
    %v796 = vpack.c.b16 %v772, %v770
    %v797 = vpack.c.b16 %v773, %v771
    %v798 = vpack.c.b16 %v776, %v774
    %v799 = vpack.c.b16 %v777, %v775
    %v800 = vpack.c.b16 %v780, %v778
    %v801 = vpack.c.b16 %v781, %v779
    %v802 = vpack.c.b16 %v784, %v782
    %v803 = vpack.c.b16 %v785, %v783
    %v804 = vpack.c.b16 %v788, %v786
    %v805 = vpack.c.b16 %v789, %v787
    %822 = vmatprep.subr.bf16.mxu0 %v791
    %823 = vmatpush1.bf16.msra.mxu0 %v790
    %824 = vmatprep.subr.bf16.mxu0 %v793
    %825 = vmatpush1.bf16.msra.mxu0 %v792
    %826 = vmatprep.subr.bf16.mxu0 %v795
    %827 = vmatpush1.bf16.msra.mxu0 %v794
    %828 = vmatprep.subr.bf16.mxu0 %v797
    %829 = vmatpush1.bf16.msra.mxu0 %v796
    %830 = vmatprep.subr.bf16.mxu0 %v799
    %831 = vmatpush1.bf16.msra.mxu0 %v798
    %832 = vmatprep.subr.bf16.mxu0 %v801
    %833 = vmatpush1.bf16.msra.mxu0 %v800
    %834 = vmatprep.subr.bf16.mxu0 %v803
    %835 = vmatpush1.bf16.msra.mxu0 %v802
    %836 = vmatprep.subr.bf16.mxu0 %v805
    %837 = vmatpush1.bf16.msra.mxu0 %v804
    %838 = vmatprep.subr.bf16.mxu0 0
    %839 = vmatpush1.bf16.msra.mxu0 0
    %840 = vmatprep.subr.bf16.mxu0 0
    %841 = vmatpush1.bf16.msra.mxu0 0
    %842 = vmatprep.subr.bf16.mxu0 0
    %843 = vmatpush1.bf16.msra.mxu0 0
    %844 = vmatprep.subr.bf16.mxu0 0
    %845 = vmatpush1.bf16.msra.mxu0 0
    %846 = vmatprep.subr.bf16.mxu0 0
    %847 = vmatpush1.bf16.msra.mxu0 0
    %848 = vmatprep.subr.bf16.mxu0 0
    %849 = vmatpush1.bf16.msra.mxu0 0
    %850 = vmatprep.subr.bf16.mxu0 0
    %851 = vmatpush1.bf16.msra.mxu0 0
    %852 = vmatprep.subr.bf16.mxu0 0
    %853 = vmatpush1.bf16.msra.mxu0 0
    %854 = vmatprep.mubr.bf16.mxu0 0
    %855 = vmatmul.mubr.bf16.gmra.mrb[0].mxu0 %v714
    %v856 = vpop.f32.mrb[0].mxu0
    %v857 = vadd.f32 %v735, %v856
    %v858 = vpop.f32.mrb[0].mxu0
    %v859 = vadd.f32 %v739, %v858
    %v860 = vpop.f32.mrb[0].mxu0
    %v861 = vadd.f32 %v735, %v860
    %v862 = vpop.f32.mrb[0].mxu0
    %v863 = vadd.f32 %v739, %v862
    %864 = vdwg.mxu0
    %v865 = vmax.f32 %v857, 0.0
    %v866 = vmax.f32 %v859, 0.0
    %v867 = vmax.f32 %v861, 0.0
    %v868 = vmax.f32 %v863, 0.0
    %v869 = vld [vmem:[%s5 + $0x3] sm:$0xff]
    %v870 = vld [vmem:[%s5 + $0xb] sm:$0x7]
    %v871 = vld [vmem:[#allocation2 + $0x1c] sm:$0xff]
    %v872 = vld [vmem:[#allocation2 + $0x24] sm:$0xff]
    %v873 = vld [vmem:[#allocation2 + $0x2c] sm:$0xff]
    %v874 = vld [vmem:[#allocation2 + $0x34] sm:$0xff]
    %v875 = vld [vmem:[#allocation2 + $0x3c] sm:$0xff]
    %v876 = vld [vmem:[#allocation2 + $0x44] sm:$0xf]
    %v877 = vld [vmem:[#allocation2 + $0x64] sm:$0xff]
    %v878 = vld [vmem:[#allocation2 + $0x6c] sm:$0xff]
    %v879 = vld [vmem:[#allocation2 + $0x74] sm:$0xff]
    %v880 = vld [vmem:[#allocation2 + $0x7c] sm:$0xff]
    %v881 = vld [vmem:[#allocation2 + $0x84] sm:$0xff]
    %v882 = vld [vmem:[#allocation2 + $0x8c] sm:$0xf]
    %v883 = vld [vmem:[#allocation2 + $0xac] sm:$0xff]
    %v884 = vld [vmem:[#allocation2 + $0xb4] sm:$0xff]
    %v885 = vld [vmem:[#allocation2 + $0xbc] sm:$0xff]
    %v886 = vld [vmem:[#allocation2 + $0xc4] sm:$0xff]
    %v887 = vld [vmem:[#allocation2 + $0xcc] sm:$0xff]
    %v888 = vld [vmem:[#allocation2 + $0xd4] sm:$0xf]
    %v889 = vld [vmem:[#allocation2 + $0xf4] sm:$0xff]
    %v890 = vld [vmem:[#allocation2 + $0xfc] sm:$0xff]
    %v891 = vld [vmem:[#allocation2 + $0x104] sm:$0xff]
    %v892 = vld [vmem:[#allocation2 + $0x10c] sm:$0xff]
    %v893 = vld [vmem:[#allocation2 + $0x114] sm:$0xff]
    %v894 = vld [vmem:[#allocation2 + $0x11c] sm:$0xf]
    %v895 = vld [vmem:[#allocation2 + $0x13c] sm:$0xff]
    %v896 = vld [vmem:[#allocation2 + $0x144] sm:$0xff]
    %v897 = vld [vmem:[#allocation2 + $0x14c] sm:$0xff]
    %v898 = vld [vmem:[#allocation2 + $0x154] sm:$0xff]
    %v899 = vld [vmem:[#allocation2 + $0x15c] sm:$0xff]
    %v900 = vld [vmem:[#allocation2 + $0x164] sm:$0xf]
    %v901 = vld [vmem:[#allocation2 + $0x184] sm:$0xff]
    %v902 = vld [vmem:[#allocation2 + $0x18c] sm:$0xff]
    %v903 = vld [vmem:[#allocation2 + $0x194] sm:$0xff]
    %v904 = vld [vmem:[#allocation2 + $0x19c] sm:$0xff]
    %v905 = vld [vmem:[#allocation2 + $0x1a4] sm:$0xff]
    %v906 = vld [vmem:[#allocation2 + $0x1ac] sm:$0xf]
    %v907 = vld [vmem:[#allocation2 + $0x1cc] sm:$0xff]
    %v908 = vld [vmem:[#allocation2 + $0x1d4] sm:$0xff]
    %v909 = vld [vmem:[#allocation2 + $0x1dc] sm:$0xff]
    %v910 = vld [vmem:[#allocation2 + $0x1e4] sm:$0xff]
    %v911 = vld [vmem:[#allocation2 + $0x1ec] sm:$0xff]
    %v912 = vld [vmem:[#allocation2 + $0x1f4] sm:$0xf]
    %v913 = vld [vmem:[#allocation2 + $0x214] sm:$0xff]
    %v914 = vld [vmem:[#allocation2 + $0x21c] sm:$0xff]
    %v915 = vld [vmem:[#allocation2 + $0x224] sm:$0xff]
    %v916 = vld [vmem:[#allocation2 + $0x22c] sm:$0xff]
    %v917 = vld [vmem:[#allocation2 + $0x234] sm:$0xff]
    %v918 = vld [vmem:[#allocation2 + $0x23c] sm:$0xf]
    %v919 = vld [vmem:[#allocation2 + $0x25c] sm:$0xff]
    %v920 = vld [vmem:[#allocation2 + $0x264] sm:$0xff]
    %v921 = vld [vmem:[#allocation2 + $0x26c] sm:$0xff]
    %v922 = vld [vmem:[#allocation2 + $0x274] sm:$0xff]
    %v923 = vld [vmem:[#allocation2 + $0x27c] sm:$0xff]
    %v924 = vld [vmem:[#allocation2 + $0x284] sm:$0xf]
    %v925 = vld [vmem:[#allocation2 + $0x2a4] sm:$0xff]
    %v926 = vld [vmem:[#allocation2 + $0x2ac] sm:$0xff]
    %v927 = vld [vmem:[#allocation2 + $0x2b4] sm:$0xff]
    %v928 = vld [vmem:[#allocation2 + $0x2bc] sm:$0xff]
    %v929 = vld [vmem:[#allocation2 + $0x2c4] sm:$0xff]
    %v930 = vld [vmem:[#allocation2 + $0x2cc] sm:$0xf]
    %v931 = vld [vmem:[#allocation2 + $0x2ec] sm:$0xff]
    %v932 = vld [vmem:[#allocation2 + $0x2f4] sm:$0xff]
    %v933 = vld [vmem:[#allocation2 + $0x2fc] sm:$0xff]
    %v934 = vld [vmem:[#allocation2 + $0x304] sm:$0xff]
    %v935 = vld [vmem:[#allocation2 + $0x30c] sm:$0xff]
    %v936 = vld [vmem:[#allocation2 + $0x314] sm:$0xf]
    %v937 = vld [vmem:[#allocation2 + $0x334] sm:$0xff]
    %v938 = vld [vmem:[#allocation2 + $0x33c] sm:$0xff]
    %v939 = vld [vmem:[#allocation2 + $0x344] sm:$0xff]
    %v940 = vld [vmem:[#allocation2 + $0x34c] sm:$0xff]
    %v941 = vld [vmem:[#allocation2 + $0x354] sm:$0xff]
    %v942 = vld [vmem:[#allocation2 + $0x35c] sm:$0xf]
    %v943 = vld [vmem:[#allocation2 + $0x37c] sm:$0xff]
    %v944 = vld [vmem:[#allocation2 + $0x384] sm:$0xff]
    %v945 = vld [vmem:[#allocation2 + $0x38c] sm:$0xff]
    %v946 = vld [vmem:[#allocation2 + $0x394] sm:$0xff]
    %v947 = vld [vmem:[#allocation2 + $0x39c] sm:$0xff]
    %v948 = vld [vmem:[#allocation2 + $0x3a4] sm:$0xf]
    %v949 = vld [vmem:[#allocation2 + $0x3c4] sm:$0xff]
    %v950 = vld [vmem:[#allocation2 + $0x3cc] sm:$0xff]
    %v951 = vld [vmem:[#allocation2 + $0x3d4] sm:$0xff]
    %v952 = vld [vmem:[#allocation2 + $0x3dc] sm:$0xff]
    %v953 = vld [vmem:[#allocation2 + $0x3e4] sm:$0xff]
    %v954 = vld [vmem:[#allocation2 + $0x3ec] sm:$0xf]
    %v955 = vld [vmem:[#allocation2 + $0x40c] sm:$0xff]
    %v956 = vld [vmem:[#allocation2 + $0x414] sm:$0xff]
    %v957 = vld [vmem:[#allocation2 + $0x41c] sm:$0xff]
    %v958 = vld [vmem:[#allocation2 + $0x424] sm:$0xff]
    %v959 = vld [vmem:[#allocation2 + $0x42c] sm:$0xff]
    %v960 = vld [vmem:[#allocation2 + $0x434] sm:$0xf]
    %v961 = vld [vmem:[#allocation2 + $0x454] sm:$0xff]
    %v962 = vld [vmem:[#allocation2 + $0x45c] sm:$0xff]
    %v963 = vld [vmem:[#allocation2 + $0x464] sm:$0xff]
    %v964 = vld [vmem:[#allocation2 + $0x46c] sm:$0xff]
    %v965 = vld [vmem:[#allocation2 + $0x474] sm:$0xff]
    %v966 = vld [vmem:[#allocation2 + $0x47c] sm:$0xf]
    %v967 = vpack.c.bf16 %v867, %v865
    %v968 = vpack.c.bf16 %v868, %v866
    %v969 = vld [vmem:[#allocation5] sm:$0xff]
    %v970 = vld [vmem:[#allocation5 + $0x8] sm:$0xff]
    %v971 = vld [vmem:[#allocation5 + $0x10] sm:$0xff]
    %v972 = vld [vmem:[#allocation5 + $0x18] sm:$0xff]
    %v973 = vld [vmem:[#allocation5 + $0x20] sm:$0xff]
    %v974 = vld [vmem:[#allocation5 + $0x28] sm:$0xf]
    %v975 = vld [vmem:[#allocation5 + $0x2c] sm:$0xff]
    %v976 = vld [vmem:[#allocation5 + $0x34] sm:$0xff]
    %v977 = vld [vmem:[#allocation5 + $0x3c] sm:$0xff]
    %v978 = vld [vmem:[#allocation5 + $0x44] sm:$0xff]
    %v979 = vld [vmem:[#allocation5 + $0x4c] sm:$0xff]
    %v980 = vld [vmem:[#allocation5 + $0x54] sm:$0xf]
    %v981 = vld [vmem:[#allocation5 + $0x58] sm:$0xff]
    %v982 = vld [vmem:[#allocation5 + $0x60] sm:$0xff]
    %v983 = vld [vmem:[#allocation5 + $0x68] sm:$0xff]
    %v984 = vld [vmem:[#allocation5 + $0x70] sm:$0xff]
    %v985 = vld [vmem:[#allocation5 + $0x78] sm:$0xff]
    %v986 = vld [vmem:[#allocation5 + $0x80] sm:$0xf]
    %v987 = vld [vmem:[#allocation5 + $0x84] sm:$0xff]
    %v988 = vld [vmem:[#allocation5 + $0x8c] sm:$0xff]
    %v989 = vld [vmem:[#allocation5 + $0x94] sm:$0xff]
    %v990 = vld [vmem:[#allocation5 + $0x9c] sm:$0xff]
    %v991 = vld [vmem:[#allocation5 + $0xa4] sm:$0xff]
    %v992 = vld [vmem:[#allocation5 + $0xac] sm:$0xf]
    %v993 = vld [vmem:[#allocation5 + $0xb0] sm:$0xff]
    %v994 = vld [vmem:[#allocation5 + $0xb8] sm:$0xff]
    %v995 = vld [vmem:[#allocation5 + $0xc0] sm:$0xff]
    %v996 = vld [vmem:[#allocation5 + $0xc8] sm:$0xff]
    %v997 = vld [vmem:[#allocation5 + $0xd0] sm:$0xff]
    %v998 = vld [vmem:[#allocation5 + $0xd8] sm:$0xf]
    %v999 = vld [vmem:[#allocation5 + $0xdc] sm:$0xff]
    %v1000 = vld [vmem:[#allocation5 + $0xe4] sm:$0xff]
    %v1001 = vld [vmem:[#allocation5 + $0xec] sm:$0xff]
    %v1002 = vld [vmem:[#allocation5 + $0xf4] sm:$0xff]
    %v1003 = vld [vmem:[#allocation5 + $0xfc] sm:$0xff]
    %v1004 = vld [vmem:[#allocation5 + $0x104] sm:$0xf]
    %v1005 = vld [vmem:[#allocation5 + $0x108] sm:$0xff]
    %v1006 = vld [vmem:[#allocation5 + $0x110] sm:$0xff]
    %v1007 = vld [vmem:[#allocation5 + $0x118] sm:$0xff]
    %v1008 = vld [vmem:[#allocation5 + $0x120] sm:$0xff]
    %v1009 = vld [vmem:[#allocation5 + $0x128] sm:$0xff]
    %v1010 = vld [vmem:[#allocation5 + $0x130] sm:$0xf]
    %v1011 = vld [vmem:[#allocation5 + $0x134] sm:$0xff]
    %v1012 = vld [vmem:[#allocation5 + $0x13c] sm:$0xff]
    %v1013 = vld [vmem:[#allocation5 + $0x144] sm:$0xff]
    %v1014 = vld [vmem:[#allocation5 + $0x14c] sm:$0xff]
    %v1015 = vld [vmem:[#allocation5 + $0x154] sm:$0xff]
    %v1016 = vld [vmem:[#allocation5 + $0x15c] sm:$0xf]
    %v1017 = vld [vmem:[#allocation5 + $0x160] sm:$0xff]
    %v1018 = vld [vmem:[#allocation5 + $0x168] sm:$0xff]
    %v1019 = vld [vmem:[#allocation5 + $0x170] sm:$0xff]
    %v1020 = vld [vmem:[#allocation5 + $0x178] sm:$0xff]
    %v1021 = vld [vmem:[#allocation5 + $0x180] sm:$0xff]
    %v1022 = vld [vmem:[#allocation5 + $0x188] sm:$0xf]
    %v1023 = vld [vmem:[#allocation5 + $0x18c] sm:$0xff]
    %v1024 = vld [vmem:[#allocation5 + $0x194] sm:$0xff]
    %v1025 = vld [vmem:[#allocation5 + $0x19c] sm:$0xff]
    %v1026 = vld [vmem:[#allocation5 + $0x1a4] sm:$0xff]
    %v1027 = vld [vmem:[#allocation5 + $0x1ac] sm:$0xff]
    %v1028 = vld [vmem:[#allocation5 + $0x1b4] sm:$0xf]
    %v1029 = vld [vmem:[#allocation5 + $0x1b8] sm:$0xff]
    %v1030 = vld [vmem:[#allocation5 + $0x1c0] sm:$0xff]
    %v1031 = vld [vmem:[#allocation5 + $0x1c8] sm:$0xff]
    %v1032 = vld [vmem:[#allocation5 + $0x1d0] sm:$0xff]
    %v1033 = vld [vmem:[#allocation5 + $0x1d8] sm:$0xff]
    %v1034 = vld [vmem:[#allocation5 + $0x1e0] sm:$0xf]
    %v1035 = vld [vmem:[#allocation5 + $0x1e4] sm:$0xff]
    %v1036 = vld [vmem:[#allocation5 + $0x1ec] sm:$0xff]
    %v1037 = vld [vmem:[#allocation5 + $0x1f4] sm:$0xff]
    %v1038 = vld [vmem:[#allocation5 + $0x1fc] sm:$0xff]
    %v1039 = vld [vmem:[#allocation5 + $0x204] sm:$0xff]
    %v1040 = vld [vmem:[#allocation5 + $0x20c] sm:$0xf]
    %v1041 = vld [vmem:[#allocation5 + $0x210] sm:$0xff]
    %v1042 = vld [vmem:[#allocation5 + $0x218] sm:$0xff]
    %v1043 = vld [vmem:[#allocation5 + $0x220] sm:$0xff]
    %v1044 = vld [vmem:[#allocation5 + $0x228] sm:$0xff]
    %v1045 = vld [vmem:[#allocation5 + $0x230] sm:$0xff]
    %v1046 = vld [vmem:[#allocation5 + $0x238] sm:$0xf]
    %v1047 = vld [vmem:[#allocation5 + $0x23c] sm:$0xff]
    %v1048 = vld [vmem:[#allocation5 + $0x244] sm:$0xff]
    %v1049 = vld [vmem:[#allocation5 + $0x24c] sm:$0xff]
    %v1050 = vld [vmem:[#allocation5 + $0x254] sm:$0xff]
    %v1051 = vld [vmem:[#allocation5 + $0x25c] sm:$0xff]
    %v1052 = vld [vmem:[#allocation5 + $0x264] sm:$0xf]
    %v1053 = vld [vmem:[#allocation5 + $0x268] sm:$0xff]
    %v1054 = vld [vmem:[#allocation5 + $0x270] sm:$0xff]
    %v1055 = vld [vmem:[#allocation5 + $0x278] sm:$0xff]
    %v1056 = vld [vmem:[#allocation5 + $0x280] sm:$0xff]
    %v1057 = vld [vmem:[#allocation5 + $0x288] sm:$0xff]
    %v1058 = vld [vmem:[#allocation5 + $0x290] sm:$0xf]
    %v1059 = vld [vmem:[#allocation5 + $0x294] sm:$0xff]
    %v1060 = vld [vmem:[#allocation5 + $0x29c] sm:$0xff]
    %v1061 = vld [vmem:[#allocation5 + $0x2a4] sm:$0xff]
    %v1062 = vld [vmem:[#allocation5 + $0x2ac] sm:$0xff]
    %v1063 = vld [vmem:[#allocation5 + $0x2b4] sm:$0xff]
    %v1064 = vld [vmem:[#allocation5 + $0x2bc] sm:$0xf]
    %v1065 = vld [vmem:[#allocation5 + $0x2c0] sm:$0xff]
    %v1066 = vld [vmem:[#allocation5 + $0x2c8] sm:$0xff]
    %v1067 = vld [vmem:[#allocation5 + $0x2d0] sm:$0xff]
    %v1068 = vld [vmem:[#allocation5 + $0x2d8] sm:$0xff]
    %v1069 = vld [vmem:[#allocation5 + $0x2e0] sm:$0xff]
    %v1070 = vld [vmem:[#allocation5 + $0x2e8] sm:$0xf]
    %v1071 = vld [vmem:[#allocation5 + $0x2ec] sm:$0xff]
    %v1072 = vld [vmem:[#allocation5 + $0x2f4] sm:$0xff]
    %v1073 = vld [vmem:[#allocation5 + $0x2fc] sm:$0xff]
    %v1074 = vld [vmem:[#allocation5 + $0x304] sm:$0xff]
    %v1075 = vld [vmem:[#allocation5 + $0x30c] sm:$0xff]
    %v1076 = vld [vmem:[#allocation5 + $0x314] sm:$0xf]
    %v1077 = vld [vmem:[#allocation5 + $0x318] sm:$0xff]
    %v1078 = vld [vmem:[#allocation5 + $0x320] sm:$0xff]
    %v1079 = vld [vmem:[#allocation5 + $0x328] sm:$0xff]
    %v1080 = vld [vmem:[#allocation5 + $0x330] sm:$0xff]
    %v1081 = vld [vmem:[#allocation5 + $0x338] sm:$0xff]
    %v1082 = vld [vmem:[#allocation5 + $0x340] sm:$0xf]
    %v1083 = vld [vmem:[#allocation5 + $0x344] sm:$0xff]
    %v1084 = vld [vmem:[#allocation5 + $0x34c] sm:$0xff]
    %v1085 = vld [vmem:[#allocation5 + $0x354] sm:$0xff]
    %v1086 = vld [vmem:[#allocation5 + $0x35c] sm:$0xff]
    %v1087 = vld [vmem:[#allocation5 + $0x364] sm:$0xff]
    %v1088 = vld [vmem:[#allocation5 + $0x36c] sm:$0xf]
    %v1089 = vld [vmem:[#allocation5 + $0x370] sm:$0xff]
    %v1090 = vld [vmem:[#allocation5 + $0x378] sm:$0xff]
    %v1091 = vld [vmem:[#allocation5 + $0x380] sm:$0xff]
    %v1092 = vld [vmem:[#allocation5 + $0x388] sm:$0xff]
    %v1093 = vld [vmem:[#allocation5 + $0x390] sm:$0xff]
    %v1094 = vld [vmem:[#allocation5 + $0x398] sm:$0xf]
    %v1095 = vld [vmem:[#allocation5 + $0x39c] sm:$0xff]
    %v1096 = vld [vmem:[#allocation5 + $0x3a4] sm:$0xff]
    %v1097 = vld [vmem:[#allocation5 + $0x3ac] sm:$0xff]
    %v1098 = vld [vmem:[#allocation5 + $0x3b4] sm:$0xff]
    %v1099 = vld [vmem:[#allocation5 + $0x3bc] sm:$0xff]
    %v1100 = vld [vmem:[#allocation5 + $0x3c4] sm:$0xf]
    %v1101 = vld [vmem:[#allocation5 + $0x3c8] sm:$0xff]
    %v1102 = vld [vmem:[#allocation5 + $0x3d0] sm:$0xff]
    %v1103 = vld [vmem:[#allocation5 + $0x3d8] sm:$0xff]
    %v1104 = vld [vmem:[#allocation5 + $0x3e0] sm:$0xff]
    %v1105 = vld [vmem:[#allocation5 + $0x3e8] sm:$0xff]
    %v1106 = vld [vmem:[#allocation5 + $0x3f0] sm:$0xf]
    %v1107 = vld [vmem:[#allocation5 + $0x3f4] sm:$0xff]
    %v1108 = vld [vmem:[#allocation5 + $0x3fc] sm:$0xff]
    %v1109 = vld [vmem:[#allocation5 + $0x404] sm:$0xff]
    %v1110 = vld [vmem:[#allocation5 + $0x40c] sm:$0xff]
    %v1111 = vld [vmem:[#allocation5 + $0x414] sm:$0xff]
    %v1112 = vld [vmem:[#allocation5 + $0x41c] sm:$0xf]
    %v1113 = vld [vmem:[#allocation5 + $0x420] sm:$0xff]
    %v1114 = vld [vmem:[#allocation5 + $0x428] sm:$0xff]
    %v1115 = vld [vmem:[#allocation5 + $0x430] sm:$0xff]
    %v1116 = vld [vmem:[#allocation5 + $0x438] sm:$0xff]
    %v1117 = vld [vmem:[#allocation5 + $0x440] sm:$0xff]
    %v1118 = vld [vmem:[#allocation5 + $0x448] sm:$0xf]
    %v1119 = vld [vmem:[#allocation5 + $0x44c] sm:$0xff]
    %v1120 = vld [vmem:[#allocation5 + $0x454] sm:$0xff]
    %v1121 = vld [vmem:[#allocation5 + $0x45c] sm:$0xff]
    %v1122 = vld [vmem:[#allocation5 + $0x464] sm:$0xff]
    %v1123 = vld [vmem:[#allocation5 + $0x46c] sm:$0xff]
    %v1124 = vld [vmem:[#allocation5 + $0x474] sm:$0xf]
    %v1125 = vld [vmem:[#allocation5 + $0x478] sm:$0xff]
    %v1126 = vld [vmem:[#allocation5 + $0x480] sm:$0xff]
    %v1127 = vld [vmem:[#allocation5 + $0x488] sm:$0xff]
    %v1128 = vld [vmem:[#allocation5 + $0x490] sm:$0xff]
    %v1129 = vld [vmem:[#allocation5 + $0x498] sm:$0xff]
    %v1130 = vld [vmem:[#allocation5 + $0x4a0] sm:$0xf]
    %v1131 = vld [vmem:[#allocation5 + $0x4a4] sm:$0xff]
    %v1132 = vld [vmem:[#allocation5 + $0x4ac] sm:$0xff]
    %v1133 = vld [vmem:[#allocation5 + $0x4b4] sm:$0xff]
    %v1134 = vld [vmem:[#allocation5 + $0x4bc] sm:$0xff]
    %v1135 = vld [vmem:[#allocation5 + $0x4c4] sm:$0xff]
    %v1136 = vld [vmem:[#allocation5 + $0x4cc] sm:$0xf]
    %v1137 = vld [vmem:[#allocation5 + $0x4d0] sm:$0xff]
    %v1138 = vld [vmem:[#allocation5 + $0x4d8] sm:$0xff]
    %v1139 = vld [vmem:[#allocation5 + $0x4e0] sm:$0xff]
    %v1140 = vld [vmem:[#allocation5 + $0x4e8] sm:$0xff]
    %v1141 = vld [vmem:[#allocation5 + $0x4f0] sm:$0xff]
    %v1142 = vld [vmem:[#allocation5 + $0x4f8] sm:$0xf]
    %v1143 = vld [vmem:[#allocation5 + $0x4fc] sm:$0xff]
    %v1144 = vld [vmem:[#allocation5 + $0x504] sm:$0xff]
    %v1145 = vld [vmem:[#allocation5 + $0x50c] sm:$0xff]
    %v1146 = vld [vmem:[#allocation5 + $0x514] sm:$0xff]
    %v1147 = vld [vmem:[#allocation5 + $0x51c] sm:$0xff]
    %v1148 = vld [vmem:[#allocation5 + $0x524] sm:$0xf]
    %v1149 = vld [vmem:[#allocation5 + $0x528] sm:$0xff]
    %v1150 = vld [vmem:[#allocation5 + $0x530] sm:$0xff]
    %v1151 = vld [vmem:[#allocation5 + $0x538] sm:$0xff]
    %v1152 = vld [vmem:[#allocation5 + $0x540] sm:$0xff]
    %v1153 = vld [vmem:[#allocation5 + $0x548] sm:$0xff]
    %v1154 = vld [vmem:[#allocation5 + $0x550] sm:$0xf]
    %v1155 = vld [vmem:[#allocation5 + $0x554] sm:$0xff]
    %v1156 = vld [vmem:[#allocation5 + $0x55c] sm:$0xff]
    %v1157 = vld [vmem:[#allocation5 + $0x564] sm:$0xff]
    %v1158 = vld [vmem:[#allocation5 + $0x56c] sm:$0xff]
    %v1159 = vld [vmem:[#allocation5 + $0x574] sm:$0xff]
    %v1160 = vld [vmem:[#allocation5 + $0x57c] sm:$0xf]
    %v1353 = vunpack.c.l.b16 %v969
    %v1354 = vunpack.c.h.b16 %v969
    %v1355 = vunpack.c.l.b16 %v970
    %v1356 = vunpack.c.h.b16 %v970
    %v1357 = vunpack.c.l.b16 %v971
    %v1358 = vunpack.c.h.b16 %v971
    %v1359 = vunpack.c.l.b16 %v972
    %v1360 = vunpack.c.h.b16 %v972
    %v1361 = vunpack.c.l.b16 %v973
    %v1362 = vunpack.c.h.b16 %v973
    %v1363 = vunpack.c.l.b16 %v974
    %v1364 = vunpack.c.l.b16 %v975
    %v1365 = vunpack.c.h.b16 %v975
    %v1366 = vunpack.c.l.b16 %v976
    %v1367 = vunpack.c.h.b16 %v976
    %v1368 = vunpack.c.l.b16 %v977
    %v1369 = vunpack.c.h.b16 %v977
    %v1370 = vunpack.c.l.b16 %v978
    %v1371 = vunpack.c.h.b16 %v978
    %v1372 = vunpack.c.l.b16 %v979
    %v1373 = vunpack.c.h.b16 %v979
    %v1374 = vunpack.c.l.b16 %v980
    %v1375 = vunpack.c.l.b16 %v981
    %v1376 = vunpack.c.h.b16 %v981
    %v1377 = vunpack.c.l.b16 %v982
    %v1378 = vunpack.c.h.b16 %v982
    %v1379 = vunpack.c.l.b16 %v983
    %v1380 = vunpack.c.h.b16 %v983
    %v1381 = vunpack.c.l.b16 %v984
    %v1382 = vunpack.c.h.b16 %v984
    %v1383 = vunpack.c.l.b16 %v985
    %v1384 = vunpack.c.h.b16 %v985
    %v1385 = vunpack.c.l.b16 %v986
    %v1386 = vunpack.c.l.b16 %v987
    %v1387 = vunpack.c.h.b16 %v987
    %v1388 = vunpack.c.l.b16 %v988
    %v1389 = vunpack.c.h.b16 %v988
    %v1390 = vunpack.c.l.b16 %v989
    %v1391 = vunpack.c.h.b16 %v989
    %v1392 = vunpack.c.l.b16 %v990
    %v1393 = vunpack.c.h.b16 %v990
    %v1394 = vunpack.c.l.b16 %v991
    %v1395 = vunpack.c.h.b16 %v991
    %v1396 = vunpack.c.l.b16 %v992
    %v1397 = vunpack.c.l.b16 %v993
    %v1398 = vunpack.c.h.b16 %v993
    %v1399 = vunpack.c.l.b16 %v994
    %v1400 = vunpack.c.h.b16 %v994
    %v1401 = vunpack.c.l.b16 %v995
    %v1402 = vunpack.c.h.b16 %v995
    %v1403 = vunpack.c.l.b16 %v996
    %v1404 = vunpack.c.h.b16 %v996
    %v1405 = vunpack.c.l.b16 %v997
    %v1406 = vunpack.c.h.b16 %v997
    %v1407 = vunpack.c.l.b16 %v998
    %v1408 = vunpack.c.l.b16 %v999
    %v1409 = vunpack.c.h.b16 %v999
    %v1410 = vunpack.c.l.b16 %v1000
    %v1411 = vunpack.c.h.b16 %v1000
    %v1412 = vunpack.c.l.b16 %v1001
    %v1413 = vunpack.c.h.b16 %v1001
    %v1414 = vunpack.c.l.b16 %v1002
    %v1415 = vunpack.c.h.b16 %v1002
    %v1416 = vunpack.c.l.b16 %v1003
    %v1417 = vunpack.c.h.b16 %v1003
    %v1418 = vunpack.c.l.b16 %v1004
    %v1419 = vunpack.c.l.b16 %v1005
    %v1420 = vunpack.c.h.b16 %v1005
    %v1421 = vunpack.c.l.b16 %v1006
    %v1422 = vunpack.c.h.b16 %v1006
    %v1423 = vunpack.c.l.b16 %v1007
    %v1424 = vunpack.c.h.b16 %v1007
    %v1425 = vunpack.c.l.b16 %v1008
    %v1426 = vunpack.c.h.b16 %v1008
    %v1427 = vunpack.c.l.b16 %v1009
    %v1428 = vunpack.c.h.b16 %v1009
    %v1429 = vunpack.c.l.b16 %v1010
    %v1430 = vunpack.c.l.b16 %v1011
    %v1431 = vunpack.c.h.b16 %v1011
    %v1432 = vunpack.c.l.b16 %v1012
    %v1433 = vunpack.c.h.b16 %v1012
    %v1434 = vunpack.c.l.b16 %v1013
    %v1435 = vunpack.c.h.b16 %v1013
    %v1436 = vunpack.c.l.b16 %v1014
    %v1437 = vunpack.c.h.b16 %v1014
    %v1438 = vunpack.c.l.b16 %v1015
    %v1439 = vunpack.c.h.b16 %v1015
    %v1440 = vunpack.c.l.b16 %v1016
    %v1441 = vunpack.c.l.b16 %v1017
    %v1442 = vunpack.c.h.b16 %v1017
    %v1443 = vunpack.c.l.b16 %v1018
    %v1444 = vunpack.c.h.b16 %v1018
    %v1445 = vunpack.c.l.b16 %v1019
    %v1446 = vunpack.c.h.b16 %v1019
    %v1447 = vunpack.c.l.b16 %v1020
    %v1448 = vunpack.c.h.b16 %v1020
    %v1449 = vunpack.c.l.b16 %v1021
    %v1450 = vunpack.c.h.b16 %v1021
    %v1451 = vunpack.c.l.b16 %v1022
    %v1452 = vunpack.c.l.b16 %v1023
    %v1453 = vunpack.c.h.b16 %v1023
    %v1454 = vunpack.c.l.b16 %v1024
    %v1455 = vunpack.c.h.b16 %v1024
    %v1456 = vunpack.c.l.b16 %v1025
    %v1457 = vunpack.c.h.b16 %v1025
    %v1458 = vunpack.c.l.b16 %v1026
    %v1459 = vunpack.c.h.b16 %v1026
    %v1460 = vunpack.c.l.b16 %v1027
    %v1461 = vunpack.c.h.b16 %v1027
    %v1462 = vunpack.c.l.b16 %v1028
    %v1463 = vunpack.c.l.b16 %v1029
    %v1464 = vunpack.c.h.b16 %v1029
    %v1465 = vunpack.c.l.b16 %v1030
    %v1466 = vunpack.c.h.b16 %v1030
    %v1467 = vunpack.c.l.b16 %v1031
    %v1468 = vunpack.c.h.b16 %v1031
    %v1469 = vunpack.c.l.b16 %v1032
    %v1470 = vunpack.c.h.b16 %v1032
    %v1471 = vunpack.c.l.b16 %v1033
    %v1472 = vunpack.c.h.b16 %v1033
    %v1473 = vunpack.c.l.b16 %v1034
    %v1474 = vunpack.c.l.b16 %v1035
    %v1475 = vunpack.c.h.b16 %v1035
    %v1476 = vunpack.c.l.b16 %v1036
    %v1477 = vunpack.c.h.b16 %v1036
    %v1478 = vunpack.c.l.b16 %v1037
    %v1479 = vunpack.c.h.b16 %v1037
    %v1480 = vunpack.c.l.b16 %v1038
    %v1481 = vunpack.c.h.b16 %v1038
    %v1482 = vunpack.c.l.b16 %v1039
    %v1483 = vunpack.c.h.b16 %v1039
    %v1484 = vunpack.c.l.b16 %v1040
    %v1485 = vunpack.c.l.b16 %v1041
    %v1486 = vunpack.c.h.b16 %v1041
    %v1487 = vunpack.c.l.b16 %v1042
    %v1488 = vunpack.c.h.b16 %v1042
    %v1489 = vunpack.c.l.b16 %v1043
    %v1490 = vunpack.c.h.b16 %v1043
    %v1491 = vunpack.c.l.b16 %v1044
    %v1492 = vunpack.c.h.b16 %v1044
    %v1493 = vunpack.c.l.b16 %v1045
    %v1494 = vunpack.c.h.b16 %v1045
    %v1495 = vunpack.c.l.b16 %v1046
    %v1496 = vunpack.c.l.b16 %v1047
    %v1497 = vunpack.c.h.b16 %v1047
    %v1498 = vunpack.c.l.b16 %v1048
    %v1499 = vunpack.c.h.b16 %v1048
    %v1500 = vunpack.c.l.b16 %v1049
    %v1501 = vunpack.c.h.b16 %v1049
    %v1502 = vunpack.c.l.b16 %v1050
    %v1503 = vunpack.c.h.b16 %v1050
    %v1504 = vunpack.c.l.b16 %v1051
    %v1505 = vunpack.c.h.b16 %v1051
    %v1506 = vunpack.c.l.b16 %v1052
    %v1507 = vunpack.c.l.b16 %v1053
    %v1508 = vunpack.c.h.b16 %v1053
    %v1509 = vunpack.c.l.b16 %v1054
    %v1510 = vunpack.c.h.b16 %v1054
    %v1511 = vunpack.c.l.b16 %v1055
    %v1512 = vunpack.c.h.b16 %v1055
    %v1513 = vunpack.c.l.b16 %v1056
    %v1514 = vunpack.c.h.b16 %v1056
    %v1515 = vunpack.c.l.b16 %v1057
    %v1516 = vunpack.c.h.b16 %v1057
    %v1517 = vunpack.c.l.b16 %v1058
    %v1518 = vunpack.c.l.b16 %v1059
    %v1519 = vunpack.c.h.b16 %v1059
    %v1520 = vunpack.c.l.b16 %v1060
    %v1521 = vunpack.c.h.b16 %v1060
    %v1522 = vunpack.c.l.b16 %v1061
    %v1523 = vunpack.c.h.b16 %v1061
    %v1524 = vunpack.c.l.b16 %v1062
    %v1525 = vunpack.c.h.b16 %v1062
    %v1526 = vunpack.c.l.b16 %v1063
    %v1527 = vunpack.c.h.b16 %v1063
    %v1528 = vunpack.c.l.b16 %v1064
    %v1529 = vunpack.c.l.b16 %v1065
    %v1530 = vunpack.c.h.b16 %v1065
    %v1531 = vunpack.c.l.b16 %v1066
    %v1532 = vunpack.c.h.b16 %v1066
    %v1533 = vunpack.c.l.b16 %v1067
    %v1534 = vunpack.c.h.b16 %v1067
    %v1535 = vunpack.c.l.b16 %v1068
    %v1536 = vunpack.c.h.b16 %v1068
    %v1537 = vunpack.c.l.b16 %v1069
    %v1538 = vunpack.c.h.b16 %v1069
    %v1539 = vunpack.c.l.b16 %v1070
    %v1540 = vunpack.c.l.b16 %v1071
    %v1541 = vunpack.c.h.b16 %v1071
    %v1542 = vunpack.c.l.b16 %v1072
    %v1543 = vunpack.c.h.b16 %v1072
    %v1544 = vunpack.c.l.b16 %v1073
    %v1545 = vunpack.c.h.b16 %v1073
    %v1546 = vunpack.c.l.b16 %v1074
    %v1547 = vunpack.c.h.b16 %v1074
    %v1548 = vunpack.c.l.b16 %v1075
    %v1549 = vunpack.c.h.b16 %v1075
    %v1550 = vunpack.c.l.b16 %v1076
    %v1551 = vunpack.c.l.b16 %v1077
    %v1552 = vunpack.c.h.b16 %v1077
    %v1553 = vunpack.c.l.b16 %v1078
    %v1554 = vunpack.c.h.b16 %v1078
    %v1555 = vunpack.c.l.b16 %v1079
    %v1556 = vunpack.c.h.b16 %v1079
    %v1557 = vunpack.c.l.b16 %v1080
    %v1558 = vunpack.c.h.b16 %v1080
    %v1559 = vunpack.c.l.b16 %v1081
    %v1560 = vunpack.c.h.b16 %v1081
    %v1561 = vunpack.c.l.b16 %v1082
    %v1562 = vunpack.c.l.b16 %v1083
    %v1563 = vunpack.c.h.b16 %v1083
    %v1564 = vunpack.c.l.b16 %v1084
    %v1565 = vunpack.c.h.b16 %v1084
    %v1566 = vunpack.c.l.b16 %v1085
    %v1567 = vunpack.c.h.b16 %v1085
    %v1568 = vunpack.c.l.b16 %v1086
    %v1569 = vunpack.c.h.b16 %v1086
    %v1570 = vunpack.c.l.b16 %v1087
    %v1571 = vunpack.c.h.b16 %v1087
    %v1572 = vunpack.c.l.b16 %v1088
    %v1573 = vunpack.c.l.b16 %v1089
    %v1574 = vunpack.c.h.b16 %v1089
    %v1575 = vunpack.c.l.b16 %v1090
    %v1576 = vunpack.c.h.b16 %v1090
    %v1577 = vunpack.c.l.b16 %v1091
    %v1578 = vunpack.c.h.b16 %v1091
    %v1579 = vunpack.c.l.b16 %v1092
    %v1580 = vunpack.c.h.b16 %v1092
    %v1581 = vunpack.c.l.b16 %v1093
    %v1582 = vunpack.c.h.b16 %v1093
    %v1583 = vunpack.c.l.b16 %v1094
    %v1584 = vunpack.c.l.b16 %v1095
    %v1585 = vunpack.c.h.b16 %v1095
    %v1586 = vunpack.c.l.b16 %v1096
    %v1587 = vunpack.c.h.b16 %v1096
    %v1588 = vunpack.c.l.b16 %v1097
    %v1589 = vunpack.c.h.b16 %v1097
    %v1590 = vunpack.c.l.b16 %v1098
    %v1591 = vunpack.c.h.b16 %v1098
    %v1592 = vunpack.c.l.b16 %v1099
    %v1593 = vunpack.c.h.b16 %v1099
    %v1594 = vunpack.c.l.b16 %v1100
    %v1595 = vunpack.c.l.b16 %v1101
    %v1596 = vunpack.c.h.b16 %v1101
    %v1597 = vunpack.c.l.b16 %v1102
    %v1598 = vunpack.c.h.b16 %v1102
    %v1599 = vunpack.c.l.b16 %v1103
    %v1600 = vunpack.c.h.b16 %v1103
    %v1601 = vunpack.c.l.b16 %v1104
    %v1602 = vunpack.c.h.b16 %v1104
    %v1603 = vunpack.c.l.b16 %v1105
    %v1604 = vunpack.c.h.b16 %v1105
    %v1605 = vunpack.c.l.b16 %v1106
    %v1606 = vunpack.c.l.b16 %v1107
    %v1607 = vunpack.c.h.b16 %v1107
    %v1608 = vunpack.c.l.b16 %v1108
    %v1609 = vunpack.c.h.b16 %v1108
    %v1610 = vunpack.c.l.b16 %v1109
    %v1611 = vunpack.c.h.b16 %v1109
    %v1612 = vunpack.c.l.b16 %v1110
    %v1613 = vunpack.c.h.b16 %v1110
    %v1614 = vunpack.c.l.b16 %v1111
    %v1615 = vunpack.c.h.b16 %v1111
    %v1616 = vunpack.c.l.b16 %v1112
    %v1617 = vunpack.c.l.b16 %v1113
    %v1618 = vunpack.c.h.b16 %v1113
    %v1619 = vunpack.c.l.b16 %v1114
    %v1620 = vunpack.c.h.b16 %v1114
    %v1621 = vunpack.c.l.b16 %v1115
    %v1622 = vunpack.c.h.b16 %v1115
    %v1623 = vunpack.c.l.b16 %v1116
    %v1624 = vunpack.c.h.b16 %v1116
    %v1625 = vunpack.c.l.b16 %v1117
    %v1626 = vunpack.c.h.b16 %v1117
    %v1627 = vunpack.c.l.b16 %v1118
    %v1628 = vunpack.c.l.b16 %v1119
    %v1629 = vunpack.c.h.b16 %v1119
    %v1630 = vunpack.c.l.b16 %v1120
    %v1631 = vunpack.c.h.b16 %v1120
    %v1632 = vunpack.c.l.b16 %v1121
    %v1633 = vunpack.c.h.b16 %v1121
    %v1634 = vunpack.c.l.b16 %v1122
    %v1635 = vunpack.c.h.b16 %v1122
    %v1636 = vunpack.c.l.b16 %v1123
    %v1637 = vunpack.c.h.b16 %v1123
    %v1638 = vunpack.c.l.b16 %v1124
    %v1639 = vunpack.c.l.b16 %v1125
    %v1640 = vunpack.c.h.b16 %v1125
    %v1641 = vunpack.c.l.b16 %v1126
    %v1642 = vunpack.c.h.b16 %v1126
    %v1643 = vunpack.c.l.b16 %v1127
    %v1644 = vunpack.c.h.b16 %v1127
    %v1645 = vunpack.c.l.b16 %v1128
    %v1646 = vunpack.c.h.b16 %v1128
    %v1647 = vunpack.c.l.b16 %v1129
    %v1648 = vunpack.c.h.b16 %v1129
    %v1649 = vunpack.c.l.b16 %v1130
    %v1650 = vunpack.c.l.b16 %v1131
    %v1651 = vunpack.c.h.b16 %v1131
    %v1652 = vunpack.c.l.b16 %v1132
    %v1653 = vunpack.c.h.b16 %v1132
    %v1654 = vunpack.c.l.b16 %v1133
    %v1655 = vunpack.c.h.b16 %v1133
    %v1656 = vunpack.c.l.b16 %v1134
    %v1657 = vunpack.c.h.b16 %v1134
    %v1658 = vunpack.c.l.b16 %v1135
    %v1659 = vunpack.c.h.b16 %v1135
    %v1660 = vunpack.c.l.b16 %v1136
    %v1661 = vunpack.c.l.b16 %v1137
    %v1662 = vunpack.c.h.b16 %v1137
    %v1663 = vunpack.c.l.b16 %v1138
    %v1664 = vunpack.c.h.b16 %v1138
    %v1665 = vunpack.c.l.b16 %v1139
    %v1666 = vunpack.c.h.b16 %v1139
    %v1667 = vunpack.c.l.b16 %v1140
    %v1668 = vunpack.c.h.b16 %v1140
    %v1669 = vunpack.c.l.b16 %v1141
    %v1670 = vunpack.c.h.b16 %v1141
    %v1671 = vunpack.c.l.b16 %v1142
    %v1672 = vunpack.c.l.b16 %v1143
    %v1673 = vunpack.c.h.b16 %v1143
    %v1674 = vunpack.c.l.b16 %v1144
    %v1675 = vunpack.c.h.b16 %v1144
    %v1676 = vunpack.c.l.b16 %v1145
    %v1677 = vunpack.c.h.b16 %v1145
    %v1678 = vunpack.c.l.b16 %v1146
    %v1679 = vunpack.c.h.b16 %v1146
    %v1680 = vunpack.c.l.b16 %v1147
    %v1681 = vunpack.c.h.b16 %v1147
    %v1682 = vunpack.c.l.b16 %v1148
    %v1683 = vunpack.c.l.b16 %v1149
    %v1684 = vunpack.c.h.b16 %v1149
    %v1685 = vunpack.c.l.b16 %v1150
    %v1686 = vunpack.c.h.b16 %v1150
    %v1687 = vunpack.c.l.b16 %v1151
    %v1688 = vunpack.c.h.b16 %v1151
    %v1689 = vunpack.c.l.b16 %v1152
    %v1690 = vunpack.c.h.b16 %v1152
    %v1691 = vunpack.c.l.b16 %v1153
    %v1692 = vunpack.c.h.b16 %v1153
    %v1693 = vunpack.c.l.b16 %v1154
    %v1694 = vunpack.c.l.b16 %v1155
    %v1695 = vunpack.c.h.b16 %v1155
    %v1696 = vunpack.c.l.b16 %v1156
    %v1697 = vunpack.c.h.b16 %v1156
    %v1698 = vunpack.c.l.b16 %v1157
    %v1699 = vunpack.c.h.b16 %v1157
    %v1700 = vunpack.c.l.b16 %v1158
    %v1701 = vunpack.c.h.b16 %v1158
    %v1702 = vunpack.c.l.b16 %v1159
    %v1703 = vunpack.c.h.b16 %v1159
    %v1704 = vunpack.c.l.b16 %v1160
    %v1705 = vpack.c.b16 %v1364, %v1353
    %v1706 = vpack.c.b16 %v1365, %v1354
    %v1707 = vpack.c.b16 %v1366, %v1355
    %v1708 = vpack.c.b16 %v1367, %v1356
    %v1709 = vpack.c.b16 %v1368, %v1357
    %v1710 = vpack.c.b16 %v1369, %v1358
    %v1711 = vpack.c.b16 %v1370, %v1359
    %v1712 = vpack.c.b16 %v1371, %v1360
    %v1713 = vpack.c.b16 %v1372, %v1361
    %v1714 = vpack.c.b16 %v1373, %v1362
    %v1715 = vpack.c.b16 %v1374, %v1363
    %v1716 = vpack.c.b16 %v1386, %v1375
    %v1717 = vpack.c.b16 %v1387, %v1376
    %v1718 = vpack.c.b16 %v1388, %v1377
    %v1719 = vpack.c.b16 %v1389, %v1378
    %v1720 = vpack.c.b16 %v1390, %v1379
    %v1721 = vpack.c.b16 %v1391, %v1380
    %v1722 = vpack.c.b16 %v1392, %v1381
    %v1723 = vpack.c.b16 %v1393, %v1382
    %v1724 = vpack.c.b16 %v1394, %v1383
    %v1725 = vpack.c.b16 %v1395, %v1384
    %v1726 = vpack.c.b16 %v1396, %v1385
    %v1727 = vpack.c.b16 %v1408, %v1397
    %v1728 = vpack.c.b16 %v1409, %v1398
    %v1729 = vpack.c.b16 %v1410, %v1399
    %v1730 = vpack.c.b16 %v1411, %v1400
    %v1731 = vpack.c.b16 %v1412, %v1401
    %v1732 = vpack.c.b16 %v1413, %v1402
    %v1733 = vpack.c.b16 %v1414, %v1403
    %v1734 = vpack.c.b16 %v1415, %v1404
    %v1735 = vpack.c.b16 %v1416, %v1405
    %v1736 = vpack.c.b16 %v1417, %v1406
    %v1737 = vpack.c.b16 %v1418, %v1407
    %v1738 = vpack.c.b16 %v1430, %v1419
    %v1739 = vpack.c.b16 %v1431, %v1420
    %v1740 = vpack.c.b16 %v1432, %v1421
    %v1741 = vpack.c.b16 %v1433, %v1422
    %v1742 = vpack.c.b16 %v1434, %v1423
    %v1743 = vpack.c.b16 %v1435, %v1424
    %v1744 = vpack.c.b16 %v1436, %v1425
    %v1745 = vpack.c.b16 %v1437, %v1426
    %v1746 = vpack.c.b16 %v1438, %v1427
    %v1747 = vpack.c.b16 %v1439, %v1428
    %v1748 = vpack.c.b16 %v1440, %v1429
    %v1749 = vpack.c.b16 %v1452, %v1441
    %v1750 = vpack.c.b16 %v1453, %v1442
    %v1751 = vpack.c.b16 %v1454, %v1443
    %v1752 = vpack.c.b16 %v1455, %v1444
    %v1753 = vpack.c.b16 %v1456, %v1445
    %v1754 = vpack.c.b16 %v1457, %v1446
    %v1755 = vpack.c.b16 %v1458, %v1447
    %v1756 = vpack.c.b16 %v1459, %v1448
    %v1757 = vpack.c.b16 %v1460, %v1449
    %v1758 = vpack.c.b16 %v1461, %v1450
    %v1759 = vpack.c.b16 %v1462, %v1451
    %v1760 = vpack.c.b16 %v1474, %v1463
    %v1761 = vpack.c.b16 %v1475, %v1464
    %v1762 = vpack.c.b16 %v1476, %v1465
    %v1763 = vpack.c.b16 %v1477, %v1466
    %v1764 = vpack.c.b16 %v1478, %v1467
    %v1765 = vpack.c.b16 %v1479, %v1468
    %v1766 = vpack.c.b16 %v1480, %v1469
    %v1767 = vpack.c.b16 %v1481, %v1470
    %v1768 = vpack.c.b16 %v1482, %v1471
    %v1769 = vpack.c.b16 %v1483, %v1472
    %v1770 = vpack.c.b16 %v1484, %v1473
    %v1771 = vpack.c.b16 %v1496, %v1485
    %v1772 = vpack.c.b16 %v1497, %v1486
    %v1773 = vpack.c.b16 %v1498, %v1487
    %v1774 = vpack.c.b16 %v1499, %v1488
    %v1775 = vpack.c.b16 %v1500, %v1489
    %v1776 = vpack.c.b16 %v1501, %v1490
    %v1777 = vpack.c.b16 %v1502, %v1491
    %v1778 = vpack.c.b16 %v1503, %v1492
    %v1779 = vpack.c.b16 %v1504, %v1493
    %v1780 = vpack.c.b16 %v1505, %v1494
    %v1781 = vpack.c.b16 %v1506, %v1495
    %v1782 = vpack.c.b16 %v1518, %v1507
    %v1783 = vpack.c.b16 %v1519, %v1508
    %v1784 = vpack.c.b16 %v1520, %v1509
    %v1785 = vpack.c.b16 %v1521, %v1510
    %v1786 = vpack.c.b16 %v1522, %v1511
    %v1787 = vpack.c.b16 %v1523, %v1512
    %v1788 = vpack.c.b16 %v1524, %v1513
    %v1789 = vpack.c.b16 %v1525, %v1514
    %v1790 = vpack.c.b16 %v1526, %v1515
    %v1791 = vpack.c.b16 %v1527, %v1516
    %v1792 = vpack.c.b16 %v1528, %v1517
    %v1793 = vpack.c.b16 %v1540, %v1529
    %v1794 = vpack.c.b16 %v1541, %v1530
    %v1795 = vpack.c.b16 %v1542, %v1531
    %v1796 = vpack.c.b16 %v1543, %v1532
    %v1797 = vpack.c.b16 %v1544, %v1533
    %v1798 = vpack.c.b16 %v1545, %v1534
    %v1799 = vpack.c.b16 %v1546, %v1535
    %v1800 = vpack.c.b16 %v1547, %v1536
    %v1801 = vpack.c.b16 %v1548, %v1537
    %v1802 = vpack.c.b16 %v1549, %v1538
    %v1803 = vpack.c.b16 %v1550, %v1539
    %v1804 = vpack.c.b16 %v1562, %v1551
    %v1805 = vpack.c.b16 %v1563, %v1552
    %v1806 = vpack.c.b16 %v1564, %v1553
    %v1807 = vpack.c.b16 %v1565, %v1554
    %v1808 = vpack.c.b16 %v1566, %v1555
    %v1809 = vpack.c.b16 %v1567, %v1556
    %v1810 = vpack.c.b16 %v1568, %v1557
    %v1811 = vpack.c.b16 %v1569, %v1558
    %v1812 = vpack.c.b16 %v1570, %v1559
    %v1813 = vpack.c.b16 %v1571, %v1560
    %v1814 = vpack.c.b16 %v1572, %v1561
    %v1815 = vpack.c.b16 %v1584, %v1573
    %v1816 = vpack.c.b16 %v1585, %v1574
    %v1817 = vpack.c.b16 %v1586, %v1575
    %v1818 = vpack.c.b16 %v1587, %v1576
    %v1819 = vpack.c.b16 %v1588, %v1577
    %v1820 = vpack.c.b16 %v1589, %v1578
    %v1821 = vpack.c.b16 %v1590, %v1579
    %v1822 = vpack.c.b16 %v1591, %v1580
    %v1823 = vpack.c.b16 %v1592, %v1581
    %v1824 = vpack.c.b16 %v1593, %v1582
    %v1825 = vpack.c.b16 %v1594, %v1583
    %v1826 = vpack.c.b16 %v1606, %v1595
    %v1827 = vpack.c.b16 %v1607, %v1596
    %v1828 = vpack.c.b16 %v1608, %v1597
    %v1829 = vpack.c.b16 %v1609, %v1598
    %v1830 = vpack.c.b16 %v1610, %v1599
    %v1831 = vpack.c.b16 %v1611, %v1600
    %v1832 = vpack.c.b16 %v1612, %v1601
    %v1833 = vpack.c.b16 %v1613, %v1602
    %v1834 = vpack.c.b16 %v1614, %v1603
    %v1835 = vpack.c.b16 %v1615, %v1604
    %v1836 = vpack.c.b16 %v1616, %v1605
    %v1837 = vpack.c.b16 %v1628, %v1617
    %v1838 = vpack.c.b16 %v1629, %v1618
    %v1839 = vpack.c.b16 %v1630, %v1619
    %v1840 = vpack.c.b16 %v1631, %v1620
    %v1841 = vpack.c.b16 %v1632, %v1621
    %v1842 = vpack.c.b16 %v1633, %v1622
    %v1843 = vpack.c.b16 %v1634, %v1623
    %v1844 = vpack.c.b16 %v1635, %v1624
    %v1845 = vpack.c.b16 %v1636, %v1625
    %v1846 = vpack.c.b16 %v1637, %v1626
    %v1847 = vpack.c.b16 %v1638, %v1627
    %v1848 = vpack.c.b16 %v1650, %v1639
    %v1849 = vpack.c.b16 %v1651, %v1640
    %v1850 = vpack.c.b16 %v1652, %v1641
    %v1851 = vpack.c.b16 %v1653, %v1642
    %v1852 = vpack.c.b16 %v1654, %v1643
    %v1853 = vpack.c.b16 %v1655, %v1644
    %v1854 = vpack.c.b16 %v1656, %v1645
    %v1855 = vpack.c.b16 %v1657, %v1646
    %v1856 = vpack.c.b16 %v1658, %v1647
    %v1857 = vpack.c.b16 %v1659, %v1648
    %v1858 = vpack.c.b16 %v1660, %v1649
    %v1859 = vpack.c.b16 %v1672, %v1661
    %v1860 = vpack.c.b16 %v1673, %v1662
    %v1861 = vpack.c.b16 %v1674, %v1663
    %v1862 = vpack.c.b16 %v1675, %v1664
    %v1863 = vpack.c.b16 %v1676, %v1665
    %v1864 = vpack.c.b16 %v1677, %v1666
    %v1865 = vpack.c.b16 %v1678, %v1667
    %v1866 = vpack.c.b16 %v1679, %v1668
    %v1867 = vpack.c.b16 %v1680, %v1669
    %v1868 = vpack.c.b16 %v1681, %v1670
    %v1869 = vpack.c.b16 %v1682, %v1671
    %v1870 = vpack.c.b16 %v1694, %v1683
    %v1871 = vpack.c.b16 %v1695, %v1684
    %v1872 = vpack.c.b16 %v1696, %v1685
    %v1873 = vpack.c.b16 %v1697, %v1686
    %v1874 = vpack.c.b16 %v1698, %v1687
    %v1875 = vpack.c.b16 %v1699, %v1688
    %v1876 = vpack.c.b16 %v1700, %v1689
    %v1877 = vpack.c.b16 %v1701, %v1690
    %v1878 = vpack.c.b16 %v1702, %v1691
    %v1879 = vpack.c.b16 %v1703, %v1692
    %v1880 = vpack.c.b16 %v1704, %v1693
    %2057 = vmatprep.subr.bf16.mxu0 %v1706
    %2058 = vmatpush1.bf16.msra.mxu0 %v1705
    %2059 = vmatprep.subr.bf16.mxu0 %v1717
    %2060 = vmatpush1.bf16.msra.mxu0 %v1716
    %2061 = vmatprep.subr.bf16.mxu0 %v1728
    %2062 = vmatpush1.bf16.msra.mxu0 %v1727
    %2063 = vmatprep.subr.bf16.mxu0 %v1739
    %2064 = vmatpush1.bf16.msra.mxu0 %v1738
    %2065 = vmatprep.subr.bf16.mxu0 %v1750
    %2066 = vmatpush1.bf16.msra.mxu0 %v1749
    %2067 = vmatprep.subr.bf16.mxu0 %v1761
    %2068 = vmatpush1.bf16.msra.mxu0 %v1760
    %2069 = vmatprep.subr.bf16.mxu0 %v1772
    %2070 = vmatpush1.bf16.msra.mxu0 %v1771
    %2071 = vmatprep.subr.bf16.mxu0 %v1783
    %2072 = vmatpush1.bf16.msra.mxu0 %v1782
    %2073 = vmatprep.subr.bf16.mxu0 %v1794
    %2074 = vmatpush1.bf16.msra.mxu0 %v1793
    %2075 = vmatprep.subr.bf16.mxu0 %v1805
    %2076 = vmatpush1.bf16.msra.mxu0 %v1804
    %2077 = vmatprep.subr.bf16.mxu0 %v1816
    %2078 = vmatpush1.bf16.msra.mxu0 %v1815
    %2079 = vmatprep.subr.bf16.mxu0 %v1827
    %2080 = vmatpush1.bf16.msra.mxu0 %v1826
    %2081 = vmatprep.subr.bf16.mxu0 %v1838
    %2082 = vmatpush1.bf16.msra.mxu0 %v1837
    %2083 = vmatprep.subr.bf16.mxu0 %v1849
    %2084 = vmatpush1.bf16.msra.mxu0 %v1848
    %2085 = vmatprep.subr.bf16.mxu0 %v1860
    %2086 = vmatpush1.bf16.msra.mxu0 %v1859
    %2087 = vmatprep.subr.bf16.mxu0 %v1871
    %2088 = vmatpush1.bf16.msra.mxu0 %v1870
    %2089 = vmatprep.mubr.bf16.mxu0 %v968
    %2090 = vmatmul.mubr.bf16.gmra.mrb[0].mxu0 %v967
    %v2091 = vpop.f32.mrb[0].mxu0
    %v2092 = vadd.f32 0.0, %v2091
    %v2093 = vpop.f32.mrb[0].mxu0
    %v2094 = vadd.f32 0.0, %v2093
    %v2095 = vpop.f32.mrb[0].mxu0
    %v2096 = vadd.f32 0.0, %v2095
    %v2097 = vpop.f32.mrb[0].mxu0
    %v2098 = vadd.f32 0.0, %v2097
    %2099 = vdwg.mxu0
    %2100 = vmatprep.subr.bf16.mxu0 %v1708
    %2101 = vmatpush1.bf16.msra.mxu0 %v1707
    %2102 = vmatprep.subr.bf16.mxu0 %v1719
    %2103 = vmatpush1.bf16.msra.mxu0 %v1718
    %2104 = vmatprep.subr.bf16.mxu0 %v1730
    %2105 = vmatpush1.bf16.msra.mxu0 %v1729
    %2106 = vmatprep.subr.bf16.mxu0 %v1741
    %2107 = vmatpush1.bf16.msra.mxu0 %v1740
    %2108 = vmatprep.subr.bf16.mxu0 %v1752
    %2109 = vmatpush1.bf16.msra.mxu0 %v1751
    %2110 = vmatprep.subr.bf16.mxu0 %v1763
    %2111 = vmatpush1.bf16.msra.mxu0 %v1762
    %2112 = vmatprep.subr.bf16.mxu0 %v1774
    %2113 = vmatpush1.bf16.msra.mxu0 %v1773
    %2114 = vmatprep.subr.bf16.mxu0 %v1785
    %2115 = vmatpush1.bf16.msra.mxu0 %v1784
    %2116 = vmatprep.subr.bf16.mxu0 %v1796
    %2117 = vmatpush1.bf16.msra.mxu0 %v1795
    %2118 = vmatprep.subr.bf16.mxu0 %v1807
    %2119 = vmatpush1.bf16.msra.mxu0 %v1806
    %2120 = vmatprep.subr.bf16.mxu0 %v1818
    %2121 = vmatpush1.bf16.msra.mxu0 %v1817
    %2122 = vmatprep.subr.bf16.mxu0 %v1829
    %2123 = vmatpush1.bf16.msra.mxu0 %v1828
    %2124 = vmatprep.subr.bf16.mxu0 %v1840
    %2125 = vmatpush1.bf16.msra.mxu0 %v1839
    %2126 = vmatprep.subr.bf16.mxu0 %v1851
    %2127 = vmatpush1.bf16.msra.mxu0 %v1850
    %2128 = vmatprep.subr.bf16.mxu0 %v1862
    %2129 = vmatpush1.bf16.msra.mxu0 %v1861
    %2130 = vmatprep.subr.bf16.mxu0 %v1873
    %2131 = vmatpush1.bf16.msra.mxu0 %v1872
    %2132 = vmatprep.mubr.bf16.mxu0 %v968
    %2133 = vmatmul.mubr.bf16.gmra.mrb[0].mxu0 %v967
    %v2134 = vpop.f32.mrb[0].mxu0
    %v2135 = vadd.f32 0.0, %v2134
    %v2136 = vpop.f32.mrb[0].mxu0
    %v2137 = vadd.f32 0.0, %v2136
    %v2138 = vpop.f32.mrb[0].mxu0
    %v2139 = vadd.f32 0.0, %v2138
    %v2140 = vpop.f32.mrb[0].mxu0
    %v2141 = vadd.f32 0.0, %v2140
    %2142 = vdwg.mxu0
    %2143 = vmatprep.subr.bf16.mxu0 %v1710
    %2144 = vmatpush1.bf16.msra.mxu0 %v1709
    %2145 = vmatprep.subr.bf16.mxu0 %v1721
    %2146 = vmatpush1.bf16.msra.mxu0 %v1720
    %2147 = vmatprep.subr.bf16.mxu0 %v1732
    %2148 = vmatpush1.bf16.msra.mxu0 %v1731
    %2149 = vmatprep.subr.bf16.mxu0 %v1743
    %2150 = vmatpush1.bf16.msra.mxu0 %v1742
    %2151 = vmatprep.subr.bf16.mxu0 %v1754
    %2152 = vmatpush1.bf16.msra.mxu0 %v1753
    %2153 = vmatprep.subr.bf16.mxu0 %v1765
    %2154 = vmatpush1.bf16.msra.mxu0 %v1764
    %2155 = vmatprep.subr.bf16.mxu0 %v1776
    %2156 = vmatpush1.bf16.msra.mxu0 %v1775
    %2157 = vmatprep.subr.bf16.mxu0 %v1787
    %2158 = vmatpush1.bf16.msra.mxu0 %v1786
    %2159 = vmatprep.subr.bf16.mxu0 %v1798
    %2160 = vmatpush1.bf16.msra.mxu0 %v1797
    %2161 = vmatprep.subr.bf16.mxu0 %v1809
    %2162 = vmatpush1.bf16.msra.mxu0 %v1808
    %2163 = vmatprep.subr.bf16.mxu0 %v1820
    %2164 = vmatpush1.bf16.msra.mxu0 %v1819
    %2165 = vmatprep.subr.bf16.mxu0 %v1831
    %2166 = vmatpush1.bf16.msra.mxu0 %v1830
    %2167 = vmatprep.subr.bf16.mxu0 %v1842
    %2168 = vmatpush1.bf16.msra.mxu0 %v1841
    %2169 = vmatprep.subr.bf16.mxu0 %v1853
    %2170 = vmatpush1.bf16.msra.mxu0 %v1852
    %2171 = vmatprep.subr.bf16.mxu0 %v1864
    %2172 = vmatpush1.bf16.msra.mxu0 %v1863
    %2173 = vmatprep.subr.bf16.mxu0 %v1875
    %2174 = vmatpush1.bf16.msra.mxu0 %v1874
    %2175 = vmatprep.mubr.bf16.mxu0 %v968
    %2176 = vmatmul.mubr.bf16.gmra.mrb[0].mxu0 %v967
    %v2177 = vpop.f32.mrb[0].mxu0
    %v2178 = vadd.f32 0.0, %v2177
    %v2179 = vpop.f32.mrb[0].mxu0
    %v2180 = vadd.f32 0.0, %v2179
    %v2181 = vpop.f32.mrb[0].mxu0
    %v2182 = vadd.f32 0.0, %v2181
    %v2183 = vpop.f32.mrb[0].mxu0
    %v2184 = vadd.f32 0.0, %v2183
    %2185 = vdwg.mxu0
    %2186 = vmatprep.subr.bf16.mxu0 %v1712
    %2187 = vmatpush1.bf16.msra.mxu0 %v1711
    %2188 = vmatprep.subr.bf16.mxu0 %v1723
    %2189 = vmatpush1.bf16.msra.mxu0 %v1722
    %2190 = vmatprep.subr.bf16.mxu0 %v1734
    %2191 = vmatpush1.bf16.msra.mxu0 %v1733
    %2192 = vmatprep.subr.bf16.mxu0 %v1745
    %2193 = vmatpush1.bf16.msra.mxu0 %v1744
    %2194 = vmatprep.subr.bf16.mxu0 %v1756
    %2195 = vmatpush1.bf16.msra.mxu0 %v1755
    %2196 = vmatprep.subr.bf16.mxu0 %v1767
    %2197 = vmatpush1.bf16.msra.mxu0 %v1766
    %2198 = vmatprep.subr.bf16.mxu0 %v1778
    %2199 = vmatpush1.bf16.msra.mxu0 %v1777
    %2200 = vmatprep.subr.bf16.mxu0 %v1789
    %2201 = vmatpush1.bf16.msra.mxu0 %v1788
    %2202 = vmatprep.subr.bf16.mxu0 %v1800
    %2203 = vmatpush1.bf16.msra.mxu0 %v1799
    %2204 = vmatprep.subr.bf16.mxu0 %v1811
    %2205 = vmatpush1.bf16.msra.mxu0 %v1810
    %2206 = vmatprep.subr.bf16.mxu0 %v1822
    %2207 = vmatpush1.bf16.msra.mxu0 %v1821
    %2208 = vmatprep.subr.bf16.mxu0 %v1833
    %2209 = vmatpush1.bf16.msra.mxu0 %v1832
    %2210 = vmatprep.subr.bf16.mxu0 %v1844
    %2211 = vmatpush1.bf16.msra.mxu0 %v1843
    %2212 = vmatprep.subr.bf16.mxu0 %v1855
    %2213 = vmatpush1.bf16.msra.mxu0 %v1854
    %2214 = vmatprep.subr.bf16.mxu0 %v1866
    %2215 = vmatpush1.bf16.msra.mxu0 %v1865
    %2216 = vmatprep.subr.bf16.mxu0 %v1877
    %2217 = vmatpush1.bf16.msra.mxu0 %v1876
    %2218 = vmatprep.mubr.bf16.mxu0 %v968
    %2219 = vmatmul.mubr.bf16.gmra.mrb[0].mxu0 %v967
    %v2220 = vpop.f32.mrb[0].mxu0
    %v2221 = vadd.f32 0.0, %v2220
    %v2222 = vpop.f32.mrb[0].mxu0
    %v2223 = vadd.f32 0.0, %v2222
    %v2224 = vpop.f32.mrb[0].mxu0
    %v2225 = vadd.f32 0.0, %v2224
    %v2226 = vpop.f32.mrb[0].mxu0
    %v2227 = vadd.f32 0.0, %v2226
    %2228 = vdwg.mxu0
    %2229 = vmatprep.subr.bf16.mxu0 %v1714
    %2230 = vmatpush1.bf16.msra.mxu0 %v1713
    %2231 = vmatprep.subr.bf16.mxu0 %v1725
    %2232 = vmatpush1.bf16.msra.mxu0 %v1724
    %2233 = vmatprep.subr.bf16.mxu0 %v1736
    %2234 = vmatpush1.bf16.msra.mxu0 %v1735
    %2235 = vmatprep.subr.bf16.mxu0 %v1747
    %2236 = vmatpush1.bf16.msra.mxu0 %v1746
    %2237 = vmatprep.subr.bf16.mxu0 %v1758
    %2238 = vmatpush1.bf16.msra.mxu0 %v1757
    %2239 = vmatprep.subr.bf16.mxu0 %v1769
    %2240 = vmatpush1.bf16.msra.mxu0 %v1768
    %2241 = vmatprep.subr.bf16.mxu0 %v1780
    %2242 = vmatpush1.bf16.msra.mxu0 %v1779
    %2243 = vmatprep.subr.bf16.mxu0 %v1791
    %2244 = vmatpush1.bf16.msra.mxu0 %v1790
    %2245 = vmatprep.subr.bf16.mxu0 %v1802
    %2246 = vmatpush1.bf16.msra.mxu0 %v1801
    %2247 = vmatprep.subr.bf16.mxu0 %v1813
    %2248 = vmatpush1.bf16.msra.mxu0 %v1812
    %2249 = vmatprep.subr.bf16.mxu0 %v1824
    %2250 = vmatpush1.bf16.msra.mxu0 %v1823
    %2251 = vmatprep.subr.bf16.mxu0 %v1835
    %2252 = vmatpush1.bf16.msra.mxu0 %v1834
    %2253 = vmatprep.subr.bf16.mxu0 %v1846
    %2254 = vmatpush1.bf16.msra.mxu0 %v1845
    %2255 = vmatprep.subr.bf16.mxu0 %v1857
    %2256 = vmatpush1.bf16.msra.mxu0 %v1856
    %2257 = vmatprep.subr.bf16.mxu0 %v1868
    %2258 = vmatpush1.bf16.msra.mxu0 %v1867
    %2259 = vmatprep.subr.bf16.mxu0 %v1879
    %2260 = vmatpush1.bf16.msra.mxu0 %v1878
    %2261 = vmatprep.mubr.bf16.mxu0 %v968
    %2262 = vmatmul.mubr.bf16.gmra.mrb[0].mxu0 %v967
    %v2263 = vpop.f32.mrb[0].mxu0
    %v2264 = vadd.f32 0.0, %v2263
    %v2265 = vpop.f32.mrb[0].mxu0
    %v2266 = vadd.f32 0.0, %v2265
    %v2267 = vpop.f32.mrb[0].mxu0
    %v2268 = vadd.f32 0.0, %v2267
    %v2269 = vpop.f32.mrb[0].mxu0
    %v2270 = vadd.f32 0.0, %v2269
    %2271 = vdwg.mxu0
    %2272 = vmatprep.subr.bf16.mxu0 0
    %2273 = vmatpush1.bf16.msra.mxu0 %v1715
    %2274 = vmatprep.subr.bf16.mxu0 0
    %2275 = vmatpush1.bf16.msra.mxu0 %v1726
    %2276 = vmatprep.subr.bf16.mxu0 0
    %2277 = vmatpush1.bf16.msra.mxu0 %v1737
    %2278 = vmatprep.subr.bf16.mxu0 0
    %2279 = vmatpush1.bf16.msra.mxu0 %v1748
    %2280 = vmatprep.subr.bf16.mxu0 0
    %2281 = vmatpush1.bf16.msra.mxu0 %v1759
    %2282 = vmatprep.subr.bf16.mxu0 0
    %2283 = vmatpush1.bf16.msra.mxu0 %v1770
    %2284 = vmatprep.subr.bf16.mxu0 0
    %2285 = vmatpush1.bf16.msra.mxu0 %v1781
    %2286 = vmatprep.subr.bf16.mxu0 0
    %2287 = vmatpush1.bf16.msra.mxu0 %v1792
    %2288 = vmatprep.subr.bf16.mxu0 0
    %2289 = vmatpush1.bf16.msra.mxu0 %v1803
    %2290 = vmatprep.subr.bf16.mxu0 0
    %2291 = vmatpush1.bf16.msra.mxu0 %v1814
    %2292 = vmatprep.subr.bf16.mxu0 0
    %2293 = vmatpush1.bf16.msra.mxu0 %v1825
    %2294 = vmatprep.subr.bf16.mxu0 0
    %2295 = vmatpush1.bf16.msra.mxu0 %v1836
    %2296 = vmatprep.subr.bf16.mxu0 0
    %2297 = vmatpush1.bf16.msra.mxu0 %v1847
    %2298 = vmatprep.subr.bf16.mxu0 0
    %2299 = vmatpush1.bf16.msra.mxu0 %v1858
    %2300 = vmatprep.subr.bf16.mxu0 0
    %2301 = vmatpush1.bf16.msra.mxu0 %v1869
    %2302 = vmatprep.subr.bf16.mxu0 0
    %2303 = vmatpush1.bf16.msra.mxu0 %v1880
    %2304 = vmatprep.mubr.bf16.mxu0 %v968
    %2305 = vmatmul.mubr.bf16.gmra.mrb[0].mxu0 %v967
    %v2306 = vpop.f32.mrb[0].mxu0
    %v2307 = vadd.f32 0.0, %v2306
    %v2308 = vpop.f32.mrb[0].mxu0
    %v2309 = vpop.f32.mrb[0].mxu0
    %v2310 = vadd.f32 0.0, %v2309
    %v2311 = vpop.f32.mrb[0].mxu0
    %2312 = vdwg.mxu0
    %v2409 = vunpack.c.l.b16 %v871
    %v2410 = vunpack.c.h.b16 %v871
    %v2411 = vunpack.c.l.b16 %v872
    %v2412 = vunpack.c.h.b16 %v872
    %v2413 = vunpack.c.l.b16 %v873
    %v2414 = vunpack.c.h.b16 %v873
    %v2415 = vunpack.c.l.b16 %v874
    %v2416 = vunpack.c.h.b16 %v874
    %v2417 = vunpack.c.l.b16 %v875
    %v2418 = vunpack.c.h.b16 %v875
    %v2419 = vunpack.c.l.b16 %v876
    %v2420 = vunpack.c.l.b16 %v877
    %v2421 = vunpack.c.h.b16 %v877
    %v2422 = vunpack.c.l.b16 %v878
    %v2423 = vunpack.c.h.b16 %v878
    %v2424 = vunpack.c.l.b16 %v879
    %v2425 = vunpack.c.h.b16 %v879
    %v2426 = vunpack.c.l.b16 %v880
    %v2427 = vunpack.c.h.b16 %v880
    %v2428 = vunpack.c.l.b16 %v881
    %v2429 = vunpack.c.h.b16 %v881
    %v2430 = vunpack.c.l.b16 %v882
    %v2431 = vunpack.c.l.b16 %v883
    %v2432 = vunpack.c.h.b16 %v883
    %v2433 = vunpack.c.l.b16 %v884
    %v2434 = vunpack.c.h.b16 %v884
    %v2435 = vunpack.c.l.b16 %v885
    %v2436 = vunpack.c.h.b16 %v885
    %v2437 = vunpack.c.l.b16 %v886
    %v2438 = vunpack.c.h.b16 %v886
    %v2439 = vunpack.c.l.b16 %v887
    %v2440 = vunpack.c.h.b16 %v887
    %v2441 = vunpack.c.l.b16 %v888
    %v2442 = vunpack.c.l.b16 %v889
    %v2443 = vunpack.c.h.b16 %v889
    %v2444 = vunpack.c.l.b16 %v890
    %v2445 = vunpack.c.h.b16 %v890
    %v2446 = vunpack.c.l.b16 %v891
    %v2447 = vunpack.c.h.b16 %v891
    %v2448 = vunpack.c.l.b16 %v892
    %v2449 = vunpack.c.h.b16 %v892
    %v2450 = vunpack.c.l.b16 %v893
    %v2451 = vunpack.c.h.b16 %v893
    %v2452 = vunpack.c.l.b16 %v894
    %v2453 = vunpack.c.l.b16 %v895
    %v2454 = vunpack.c.h.b16 %v895
    %v2455 = vunpack.c.l.b16 %v896
    %v2456 = vunpack.c.h.b16 %v896
    %v2457 = vunpack.c.l.b16 %v897
    %v2458 = vunpack.c.h.b16 %v897
    %v2459 = vunpack.c.l.b16 %v898
    %v2460 = vunpack.c.h.b16 %v898
    %v2461 = vunpack.c.l.b16 %v899
    %v2462 = vunpack.c.h.b16 %v899
    %v2463 = vunpack.c.l.b16 %v900
    %v2464 = vunpack.c.l.b16 %v901
    %v2465 = vunpack.c.h.b16 %v901
    %v2466 = vunpack.c.l.b16 %v902
    %v2467 = vunpack.c.h.b16 %v902
    %v2468 = vunpack.c.l.b16 %v903
    %v2469 = vunpack.c.h.b16 %v903
    %v2470 = vunpack.c.l.b16 %v904
    %v2471 = vunpack.c.h.b16 %v904
    %v2472 = vunpack.c.l.b16 %v905
    %v2473 = vunpack.c.h.b16 %v905
    %v2474 = vunpack.c.l.b16 %v906
    %v2475 = vunpack.c.l.b16 %v907
    %v2476 = vunpack.c.h.b16 %v907
    %v2477 = vunpack.c.l.b16 %v908
    %v2478 = vunpack.c.h.b16 %v908
    %v2479 = vunpack.c.l.b16 %v909
    %v2480 = vunpack.c.h.b16 %v909
    %v2481 = vunpack.c.l.b16 %v910
    %v2482 = vunpack.c.h.b16 %v910
    %v2483 = vunpack.c.l.b16 %v911
    %v2484 = vunpack.c.h.b16 %v911
    %v2485 = vunpack.c.l.b16 %v912
    %v2486 = vunpack.c.l.b16 %v913
    %v2487 = vunpack.c.h.b16 %v913
    %v2488 = vunpack.c.l.b16 %v914
    %v2489 = vunpack.c.h.b16 %v914
    %v2490 = vunpack.c.l.b16 %v915
    %v2491 = vunpack.c.h.b16 %v915
    %v2492 = vunpack.c.l.b16 %v916
    %v2493 = vunpack.c.h.b16 %v916
    %v2494 = vunpack.c.l.b16 %v917
    %v2495 = vunpack.c.h.b16 %v917
    %v2496 = vunpack.c.l.b16 %v918
    %v2497 = vunpack.c.l.b16 %v919
    %v2498 = vunpack.c.h.b16 %v919
    %v2499 = vunpack.c.l.b16 %v920
    %v2500 = vunpack.c.h.b16 %v920
    %v2501 = vunpack.c.l.b16 %v921
    %v2502 = vunpack.c.h.b16 %v921
    %v2503 = vunpack.c.l.b16 %v922
    %v2504 = vunpack.c.h.b16 %v922
    %v2505 = vunpack.c.l.b16 %v923
    %v2506 = vunpack.c.h.b16 %v923
    %v2507 = vunpack.c.l.b16 %v924
    %v2508 = vunpack.c.l.b16 %v925
    %v2509 = vunpack.c.h.b16 %v925
    %v2510 = vunpack.c.l.b16 %v926
    %v2511 = vunpack.c.h.b16 %v926
    %v2512 = vunpack.c.l.b16 %v927
    %v2513 = vunpack.c.h.b16 %v927
    %v2514 = vunpack.c.l.b16 %v928
    %v2515 = vunpack.c.h.b16 %v928
    %v2516 = vunpack.c.l.b16 %v929
    %v2517 = vunpack.c.h.b16 %v929
    %v2518 = vunpack.c.l.b16 %v930
    %v2519 = vunpack.c.l.b16 %v931
    %v2520 = vunpack.c.h.b16 %v931
    %v2521 = vunpack.c.l.b16 %v932
    %v2522 = vunpack.c.h.b16 %v932
    %v2523 = vunpack.c.l.b16 %v933
    %v2524 = vunpack.c.h.b16 %v933
    %v2525 = vunpack.c.l.b16 %v934
    %v2526 = vunpack.c.h.b16 %v934
    %v2527 = vunpack.c.l.b16 %v935
    %v2528 = vunpack.c.h.b16 %v935
    %v2529 = vunpack.c.l.b16 %v936
    %v2530 = vunpack.c.l.b16 %v937
    %v2531 = vunpack.c.h.b16 %v937
    %v2532 = vunpack.c.l.b16 %v938
    %v2533 = vunpack.c.h.b16 %v938
    %v2534 = vunpack.c.l.b16 %v939
    %v2535 = vunpack.c.h.b16 %v939
    %v2536 = vunpack.c.l.b16 %v940
    %v2537 = vunpack.c.h.b16 %v940
    %v2538 = vunpack.c.l.b16 %v941
    %v2539 = vunpack.c.h.b16 %v941
    %v2540 = vunpack.c.l.b16 %v942
    %v2541 = vunpack.c.l.b16 %v943
    %v2542 = vunpack.c.h.b16 %v943
    %v2543 = vunpack.c.l.b16 %v944
    %v2544 = vunpack.c.h.b16 %v944
    %v2545 = vunpack.c.l.b16 %v945
    %v2546 = vunpack.c.h.b16 %v945
    %v2547 = vunpack.c.l.b16 %v946
    %v2548 = vunpack.c.h.b16 %v946
    %v2549 = vunpack.c.l.b16 %v947
    %v2550 = vunpack.c.h.b16 %v947
    %v2551 = vunpack.c.l.b16 %v948
    %v2552 = vunpack.c.l.b16 %v949
    %v2553 = vunpack.c.h.b16 %v949
    %v2554 = vunpack.c.l.b16 %v950
    %v2555 = vunpack.c.h.b16 %v950
    %v2556 = vunpack.c.l.b16 %v951
    %v2557 = vunpack.c.h.b16 %v951
    %v2558 = vunpack.c.l.b16 %v952
    %v2559 = vunpack.c.h.b16 %v952
    %v2560 = vunpack.c.l.b16 %v953
    %v2561 = vunpack.c.h.b16 %v953
    %v2562 = vunpack.c.l.b16 %v954
    %v2563 = vunpack.c.l.b16 %v955
    %v2564 = vunpack.c.h.b16 %v955
    %v2565 = vunpack.c.l.b16 %v956
    %v2566 = vunpack.c.h.b16 %v956
    %v2567 = vunpack.c.l.b16 %v957
    %v2568 = vunpack.c.h.b16 %v957
    %v2569 = vunpack.c.l.b16 %v958
    %v2570 = vunpack.c.h.b16 %v958
    %v2571 = vunpack.c.l.b16 %v959
    %v2572 = vunpack.c.h.b16 %v959
    %v2573 = vunpack.c.l.b16 %v960
    %v2574 = vunpack.c.l.b16 %v961
    %v2575 = vunpack.c.h.b16 %v961
    %v2576 = vunpack.c.l.b16 %v962
    %v2577 = vunpack.c.h.b16 %v962
    %v2578 = vunpack.c.l.b16 %v963
    %v2579 = vunpack.c.h.b16 %v963
    %v2580 = vunpack.c.l.b16 %v964
    %v2581 = vunpack.c.h.b16 %v964
    %v2582 = vunpack.c.l.b16 %v965
    %v2583 = vunpack.c.h.b16 %v965
    %v2584 = vunpack.c.l.b16 %v966
    %v2585 = vpack.c.b16 %v2420, %v2409
    %v2586 = vpack.c.b16 %v2421, %v2410
    %v2587 = vpack.c.b16 %v2422, %v2411
    %v2588 = vpack.c.b16 %v2423, %v2412
    %v2589 = vpack.c.b16 %v2424, %v2413
    %v2590 = vpack.c.b16 %v2425, %v2414
    %v2591 = vpack.c.b16 %v2426, %v2415
    %v2592 = vpack.c.b16 %v2427, %v2416
    %v2593 = vpack.c.b16 %v2428, %v2417
    %v2594 = vpack.c.b16 %v2429, %v2418
    %v2595 = vpack.c.b16 %v2430, %v2419
    %v2596 = vpack.c.b16 %v2442, %v2431
    %v2597 = vpack.c.b16 %v2443, %v2432
    %v2598 = vpack.c.b16 %v2444, %v2433
    %v2599 = vpack.c.b16 %v2445, %v2434
    %v2600 = vpack.c.b16 %v2446, %v2435
    %v2601 = vpack.c.b16 %v2447, %v2436
    %v2602 = vpack.c.b16 %v2448, %v2437
    %v2603 = vpack.c.b16 %v2449, %v2438
    %v2604 = vpack.c.b16 %v2450, %v2439
    %v2605 = vpack.c.b16 %v2451, %v2440
    %v2606 = vpack.c.b16 %v2452, %v2441
    %v2607 = vpack.c.b16 %v2464, %v2453
    %v2608 = vpack.c.b16 %v2465, %v2454
    %v2609 = vpack.c.b16 %v2466, %v2455
    %v2610 = vpack.c.b16 %v2467, %v2456
    %v2611 = vpack.c.b16 %v2468, %v2457
    %v2612 = vpack.c.b16 %v2469, %v2458
    %v2613 = vpack.c.b16 %v2470, %v2459
    %v2614 = vpack.c.b16 %v2471, %v2460
    %v2615 = vpack.c.b16 %v2472, %v2461
    %v2616 = vpack.c.b16 %v2473, %v2462
    %v2617 = vpack.c.b16 %v2474, %v2463
    %v2618 = vpack.c.b16 %v2486, %v2475
    %v2619 = vpack.c.b16 %v2487, %v2476
    %v2620 = vpack.c.b16 %v2488, %v2477
    %v2621 = vpack.c.b16 %v2489, %v2478
    %v2622 = vpack.c.b16 %v2490, %v2479
    %v2623 = vpack.c.b16 %v2491, %v2480
    %v2624 = vpack.c.b16 %v2492, %v2481
    %v2625 = vpack.c.b16 %v2493, %v2482
    %v2626 = vpack.c.b16 %v2494, %v2483
    %v2627 = vpack.c.b16 %v2495, %v2484
    %v2628 = vpack.c.b16 %v2496, %v2485
    %v2629 = vpack.c.b16 %v2508, %v2497
    %v2630 = vpack.c.b16 %v2509, %v2498
    %v2631 = vpack.c.b16 %v2510, %v2499
    %v2632 = vpack.c.b16 %v2511, %v2500
    %v2633 = vpack.c.b16 %v2512, %v2501
    %v2634 = vpack.c.b16 %v2513, %v2502
    %v2635 = vpack.c.b16 %v2514, %v2503
    %v2636 = vpack.c.b16 %v2515, %v2504
    %v2637 = vpack.c.b16 %v2516, %v2505
    %v2638 = vpack.c.b16 %v2517, %v2506
    %v2639 = vpack.c.b16 %v2518, %v2507
    %v2640 = vpack.c.b16 %v2530, %v2519
    %v2641 = vpack.c.b16 %v2531, %v2520
    %v2642 = vpack.c.b16 %v2532, %v2521
    %v2643 = vpack.c.b16 %v2533, %v2522
    %v2644 = vpack.c.b16 %v2534, %v2523
    %v2645 = vpack.c.b16 %v2535, %v2524
    %v2646 = vpack.c.b16 %v2536, %v2525
    %v2647 = vpack.c.b16 %v2537, %v2526
    %v2648 = vpack.c.b16 %v2538, %v2527
    %v2649 = vpack.c.b16 %v2539, %v2528
    %v2650 = vpack.c.b16 %v2540, %v2529
    %v2651 = vpack.c.b16 %v2552, %v2541
    %v2652 = vpack.c.b16 %v2553, %v2542
    %v2653 = vpack.c.b16 %v2554, %v2543
    %v2654 = vpack.c.b16 %v2555, %v2544
    %v2655 = vpack.c.b16 %v2556, %v2545
    %v2656 = vpack.c.b16 %v2557, %v2546
    %v2657 = vpack.c.b16 %v2558, %v2547
    %v2658 = vpack.c.b16 %v2559, %v2548
    %v2659 = vpack.c.b16 %v2560, %v2549
    %v2660 = vpack.c.b16 %v2561, %v2550
    %v2661 = vpack.c.b16 %v2562, %v2551
    %v2662 = vpack.c.b16 %v2574, %v2563
    %v2663 = vpack.c.b16 %v2575, %v2564
    %v2664 = vpack.c.b16 %v2576, %v2565
    %v2665 = vpack.c.b16 %v2577, %v2566
    %v2666 = vpack.c.b16 %v2578, %v2567
    %v2667 = vpack.c.b16 %v2579, %v2568
    %v2668 = vpack.c.b16 %v2580, %v2569
    %v2669 = vpack.c.b16 %v2581, %v2570
    %v2670 = vpack.c.b16 %v2582, %v2571
    %v2671 = vpack.c.b16 %v2583, %v2572
    %v2672 = vpack.c.b16 %v2584, %v2573
    %2761 = vmatprep.subr.bf16.mxu0 %v2586
    %2762 = vmatpush1.bf16.msra.mxu0 %v2585
    %2763 = vmatprep.subr.bf16.mxu0 %v2597
    %2764 = vmatpush1.bf16.msra.mxu0 %v2596
    %2765 = vmatprep.subr.bf16.mxu0 %v2608
    %2766 = vmatpush1.bf16.msra.mxu0 %v2607
    %2767 = vmatprep.subr.bf16.mxu0 %v2619
    %2768 = vmatpush1.bf16.msra.mxu0 %v2618
    %2769 = vmatprep.subr.bf16.mxu0 %v2630
    %2770 = vmatpush1.bf16.msra.mxu0 %v2629
    %2771 = vmatprep.subr.bf16.mxu0 %v2641
    %2772 = vmatpush1.bf16.msra.mxu0 %v2640
    %2773 = vmatprep.subr.bf16.mxu0 %v2652
    %2774 = vmatpush1.bf16.msra.mxu0 %v2651
    %2775 = vmatprep.subr.bf16.mxu0 %v2663
    %2776 = vmatpush1.bf16.msra.mxu0 %v2662
    %2777 = vmatprep.subr.bf16.mxu0 0
    %2778 = vmatpush1.bf16.msra.mxu0 0
    %2779 = vmatprep.subr.bf16.mxu0 0
    %2780 = vmatpush1.bf16.msra.mxu0 0
    %2781 = vmatprep.subr.bf16.mxu0 0
    %2782 = vmatpush1.bf16.msra.mxu0 0
    %2783 = vmatprep.subr.bf16.mxu0 0
    %2784 = vmatpush1.bf16.msra.mxu0 0
    %2785 = vmatprep.subr.bf16.mxu0 0
    %2786 = vmatpush1.bf16.msra.mxu0 0
    %2787 = vmatprep.subr.bf16.mxu0 0
    %2788 = vmatpush1.bf16.msra.mxu0 0
    %2789 = vmatprep.subr.bf16.mxu0 0
    %2790 = vmatpush1.bf16.msra.mxu0 0
    %2791 = vmatprep.subr.bf16.mxu0 0
    %2792 = vmatpush1.bf16.msra.mxu0 0
    %2793 = vmatprep.mubr.bf16.mxu0 0
    %2794 = vmatmul.mubr.bf16.gmra.mrb[0].mxu0 %v714
    %v2795 = vpop.f32.mrb[0].mxu0
    %v2796 = vadd.f32 %v2092, %v2795
    %v2797 = vpop.f32.mrb[0].mxu0
    %v2798 = vadd.f32 %v2094, %v2797
    %v2799 = vpop.f32.mrb[0].mxu0
    %v2800 = vadd.f32 %v2096, %v2799
    %v2801 = vpop.f32.mrb[0].mxu0
    %v2802 = vadd.f32 %v2098, %v2801
    %2803 = vdwg.mxu0
    %2804 = vmatprep.subr.bf16.mxu0 %v2588
    %2805 = vmatpush1.bf16.msra.mxu0 %v2587
    %2806 = vmatprep.subr.bf16.mxu0 %v2599
    %2807 = vmatpush1.bf16.msra.mxu0 %v2598
    %2808 = vmatprep.subr.bf16.mxu0 %v2610
    %2809 = vmatpush1.bf16.msra.mxu0 %v2609
    %2810 = vmatprep.subr.bf16.mxu0 %v2621
    %2811 = vmatpush1.bf16.msra.mxu0 %v2620
    %2812 = vmatprep.subr.bf16.mxu0 %v2632
    %2813 = vmatpush1.bf16.msra.mxu0 %v2631
    %2814 = vmatprep.subr.bf16.mxu0 %v2643
    %2815 = vmatpush1.bf16.msra.mxu0 %v2642
    %2816 = vmatprep.subr.bf16.mxu0 %v2654
    %2817 = vmatpush1.bf16.msra.mxu0 %v2653
    %2818 = vmatprep.subr.bf16.mxu0 %v2665
    %2819 = vmatpush1.bf16.msra.mxu0 %v2664
    %2820 = vmatprep.subr.bf16.mxu0 0
    %2821 = vmatpush1.bf16.msra.mxu0 0
    %2822 = vmatprep.subr.bf16.mxu0 0
    %2823 = vmatpush1.bf16.msra.mxu0 0
    %2824 = vmatprep.subr.bf16.mxu0 0
    %2825 = vmatpush1.bf16.msra.mxu0 0
    %2826 = vmatprep.subr.bf16.mxu0 0
    %2827 = vmatpush1.bf16.msra.mxu0 0
    %2828 = vmatprep.subr.bf16.mxu0 0
    %2829 = vmatpush1.bf16.msra.mxu0 0
    %2830 = vmatprep.subr.bf16.mxu0 0
    %2831 = vmatpush1.bf16.msra.mxu0 0
    %2832 = vmatprep.subr.bf16.mxu0 0
    %2833 = vmatpush1.bf16.msra.mxu0 0
    %2834 = vmatprep.subr.bf16.mxu0 0
    %2835 = vmatpush1.bf16.msra.mxu0 0
    %2836 = vmatprep.mubr.bf16.mxu0 0
    %2837 = vmatmul.mubr.bf16.gmra.mrb[0].mxu0 %v714
    %v2838 = vpop.f32.mrb[0].mxu0
    %v2839 = vadd.f32 %v2135, %v2838
    %v2840 = vpop.f32.mrb[0].mxu0
    %v2841 = vadd.f32 %v2137, %v2840
    %v2842 = vpop.f32.mrb[0].mxu0
    %v2843 = vadd.f32 %v2139, %v2842
    %v2844 = vpop.f32.mrb[0].mxu0
    %v2845 = vadd.f32 %v2141, %v2844
    %2846 = vdwg.mxu0
    %2847 = vmatprep.subr.bf16.mxu0 %v2590
    %2848 = vmatpush1.bf16.msra.mxu0 %v2589
    %2849 = vmatprep.subr.bf16.mxu0 %v2601
    %2850 = vmatpush1.bf16.msra.mxu0 %v2600
    %2851 = vmatprep.subr.bf16.mxu0 %v2612
    %2852 = vmatpush1.bf16.msra.mxu0 %v2611
    %2853 = vmatprep.subr.bf16.mxu0 %v2623
    %2854 = vmatpush1.bf16.msra.mxu0 %v2622
    %2855 = vmatprep.subr.bf16.mxu0 %v2634
    %2856 = vmatpush1.bf16.msra.mxu0 %v2633
    %2857 = vmatprep.subr.bf16.mxu0 %v2645
    %2858 = vmatpush1.bf16.msra.mxu0 %v2644
    %2859 = vmatprep.subr.bf16.mxu0 %v2656
    %2860 = vmatpush1.bf16.msra.mxu0 %v2655
    %2861 = vmatprep.subr.bf16.mxu0 %v2667
    %2862 = vmatpush1.bf16.msra.mxu0 %v2666
    %2863 = vmatprep.subr.bf16.mxu0 0
    %2864 = vmatpush1.bf16.msra.mxu0 0
    %2865 = vmatprep.subr.bf16.mxu0 0
    %2866 = vmatpush1.bf16.msra.mxu0 0
    %2867 = vmatprep.subr.bf16.mxu0 0
    %2868 = vmatpush1.bf16.msra.mxu0 0
    %2869 = vmatprep.subr.bf16.mxu0 0
    %2870 = vmatpush1.bf16.msra.mxu0 0
    %2871 = vmatprep.subr.bf16.mxu0 0
    %2872 = vmatpush1.bf16.msra.mxu0 0
    %2873 = vmatprep.subr.bf16.mxu0 0
    %2874 = vmatpush1.bf16.msra.mxu0 0
    %2875 = vmatprep.subr.bf16.mxu0 0
    %2876 = vmatpush1.bf16.msra.mxu0 0
    %2877 = vmatprep.subr.bf16.mxu0 0
    %2878 = vmatpush1.bf16.msra.mxu0 0
    %2879 = vmatprep.mubr.bf16.mxu0 0
    %2880 = vmatmul.mubr.bf16.gmra.mrb[0].mxu0 %v714
    %v2881 = vpop.f32.mrb[0].mxu0
    %v2882 = vadd.f32 %v2178, %v2881
    %v2883 = vpop.f32.mrb[0].mxu0
    %v2884 = vadd.f32 %v2180, %v2883
    %v2885 = vpop.f32.mrb[0].mxu0
    %v2886 = vadd.f32 %v2182, %v2885
    %v2887 = vpop.f32.mrb[0].mxu0
    %v2888 = vadd.f32 %v2184, %v2887
    %2889 = vdwg.mxu0
    %2890 = vmatprep.subr.bf16.mxu0 %v2592
    %2891 = vmatpush1.bf16.msra.mxu0 %v2591
    %2892 = vmatprep.subr.bf16.mxu0 %v2603
    %2893 = vmatpush1.bf16.msra.mxu0 %v2602
    %2894 = vmatprep.subr.bf16.mxu0 %v2614
    %2895 = vmatpush1.bf16.msra.mxu0 %v2613
    %2896 = vmatprep.subr.bf16.mxu0 %v2625
    %2897 = vmatpush1.bf16.msra.mxu0 %v2624
    %2898 = vmatprep.subr.bf16.mxu0 %v2636
    %2899 = vmatpush1.bf16.msra.mxu0 %v2635
    %2900 = vmatprep.subr.bf16.mxu0 %v2647
    %2901 = vmatpush1.bf16.msra.mxu0 %v2646
    %2902 = vmatprep.subr.bf16.mxu0 %v2658
    %2903 = vmatpush1.bf16.msra.mxu0 %v2657
    %2904 = vmatprep.subr.bf16.mxu0 %v2669
    %2905 = vmatpush1.bf16.msra.mxu0 %v2668
    %2906 = vmatprep.subr.bf16.mxu0 0
    %2907 = vmatpush1.bf16.msra.mxu0 0
    %2908 = vmatprep.subr.bf16.mxu0 0
    %2909 = vmatpush1.bf16.msra.mxu0 0
    %2910 = vmatprep.subr.bf16.mxu0 0
    %2911 = vmatpush1.bf16.msra.mxu0 0
    %2912 = vmatprep.subr.bf16.mxu0 0
    %2913 = vmatpush1.bf16.msra.mxu0 0
    %2914 = vmatprep.subr.bf16.mxu0 0
    %2915 = vmatpush1.bf16.msra.mxu0 0
    %2916 = vmatprep.subr.bf16.mxu0 0
    %2917 = vmatpush1.bf16.msra.mxu0 0
    %2918 = vmatprep.subr.bf16.mxu0 0
    %2919 = vmatpush1.bf16.msra.mxu0 0
    %2920 = vmatprep.subr.bf16.mxu0 0
    %2921 = vmatpush1.bf16.msra.mxu0 0
    %2922 = vmatprep.mubr.bf16.mxu0 0
    %2923 = vmatmul.mubr.bf16.gmra.mrb[0].mxu0 %v714
    %v2924 = vpop.f32.mrb[0].mxu0
    %v2925 = vadd.f32 %v2221, %v2924
    %v2926 = vpop.f32.mrb[0].mxu0
    %v2927 = vadd.f32 %v2223, %v2926
    %v2928 = vpop.f32.mrb[0].mxu0
    %v2929 = vadd.f32 %v2225, %v2928
    %v2930 = vpop.f32.mrb[0].mxu0
    %v2931 = vadd.f32 %v2227, %v2930
    %2932 = vdwg.mxu0
    %2933 = vmatprep.subr.bf16.mxu0 %v2594
    %2934 = vmatpush1.bf16.msra.mxu0 %v2593
    %2935 = vmatprep.subr.bf16.mxu0 %v2605
    %2936 = vmatpush1.bf16.msra.mxu0 %v2604
    %2937 = vmatprep.subr.bf16.mxu0 %v2616
    %2938 = vmatpush1.bf16.msra.mxu0 %v2615
    %2939 = vmatprep.subr.bf16.mxu0 %v2627
    %2940 = vmatpush1.bf16.msra.mxu0 %v2626
    %2941 = vmatprep.subr.bf16.mxu0 %v2638
    %2942 = vmatpush1.bf16.msra.mxu0 %v2637
    %2943 = vmatprep.subr.bf16.mxu0 %v2649
    %2944 = vmatpush1.bf16.msra.mxu0 %v2648
    %2945 = vmatprep.subr.bf16.mxu0 %v2660
    %2946 = vmatpush1.bf16.msra.mxu0 %v2659
    %2947 = vmatprep.subr.bf16.mxu0 %v2671
    %2948 = vmatpush1.bf16.msra.mxu0 %v2670
    %2949 = vmatprep.subr.bf16.mxu0 0
    %2950 = vmatpush1.bf16.msra.mxu0 0
    %2951 = vmatprep.subr.bf16.mxu0 0
    %2952 = vmatpush1.bf16.msra.mxu0 0
    %2953 = vmatprep.subr.bf16.mxu0 0
    %2954 = vmatpush1.bf16.msra.mxu0 0
    %2955 = vmatprep.subr.bf16.mxu0 0
    %2956 = vmatpush1.bf16.msra.mxu0 0
    %2957 = vmatprep.subr.bf16.mxu0 0
    %2958 = vmatpush1.bf16.msra.mxu0 0
    %2959 = vmatprep.subr.bf16.mxu0 0
    %2960 = vmatpush1.bf16.msra.mxu0 0
    %2961 = vmatprep.subr.bf16.mxu0 0
    %2962 = vmatpush1.bf16.msra.mxu0 0
    %2963 = vmatprep.subr.bf16.mxu0 0
    %2964 = vmatpush1.bf16.msra.mxu0 0
    %2965 = vmatprep.mubr.bf16.mxu0 0
    %2966 = vmatmul.mubr.bf16.gmra.mrb[0].mxu0 %v714
    %v2967 = vpop.f32.mrb[0].mxu0
    %v2968 = vadd.f32 %v2264, %v2967
    %v2969 = vpop.f32.mrb[0].mxu0
    %v2970 = vadd.f32 %v2266, %v2969
    %v2971 = vpop.f32.mrb[0].mxu0
    %v2972 = vadd.f32 %v2268, %v2971
    %v2973 = vpop.f32.mrb[0].mxu0
    %v2974 = vadd.f32 %v2270, %v2973
    %2975 = vdwg.mxu0
    %2976 = vmatprep.subr.bf16.mxu0 0
    %2977 = vmatpush1.bf16.msra.mxu0 %v2595
    %2978 = vmatprep.subr.bf16.mxu0 0
    %2979 = vmatpush1.bf16.msra.mxu0 %v2606
    %2980 = vmatprep.subr.bf16.mxu0 0
    %2981 = vmatpush1.bf16.msra.mxu0 %v2617
    %2982 = vmatprep.subr.bf16.mxu0 0
    %2983 = vmatpush1.bf16.msra.mxu0 %v2628
    %2984 = vmatprep.subr.bf16.mxu0 0
    %2985 = vmatpush1.bf16.msra.mxu0 %v2639
    %2986 = vmatprep.subr.bf16.mxu0 0
    %2987 = vmatpush1.bf16.msra.mxu0 %v2650
    %2988 = vmatprep.subr.bf16.mxu0 0
    %2989 = vmatpush1.bf16.msra.mxu0 %v2661
    %2990 = vmatprep.subr.bf16.mxu0 0
    %2991 = vmatpush1.bf16.msra.mxu0 %v2672
    %2992 = vmatprep.subr.bf16.mxu0 0
    %2993 = vmatpush1.bf16.msra.mxu0 0
    %2994 = vmatprep.subr.bf16.mxu0 0
    %2995 = vmatpush1.bf16.msra.mxu0 0
    %2996 = vmatprep.subr.bf16.mxu0 0
    %2997 = vmatpush1.bf16.msra.mxu0 0
    %2998 = vmatprep.subr.bf16.mxu0 0
    %2999 = vmatpush1.bf16.msra.mxu0 0
    %3000 = vmatprep.subr.bf16.mxu0 0
    %3001 = vmatpush1.bf16.msra.mxu0 0
    %3002 = vmatprep.subr.bf16.mxu0 0
    %3003 = vmatpush1.bf16.msra.mxu0 0
    %3004 = vmatprep.subr.bf16.mxu0 0
    %3005 = vmatpush1.bf16.msra.mxu0 0
    %3006 = vmatprep.subr.bf16.mxu0 0
    %3007 = vmatpush1.bf16.msra.mxu0 0
    %3008 = vmatprep.mubr.bf16.mxu0 0
    %3009 = vmatmul.mubr.bf16.gmra.mrb[0].mxu0 %v714
    %v3010 = vpop.f32.mrb[0].mxu0
    %v3011 = vadd.f32 %v2307, %v3010
    %v3012 = vpop.f32.mrb[0].mxu0
    %v3013 = vpop.f32.mrb[0].mxu0
    %v3014 = vadd.f32 %v2310, %v3013
    %v3015 = vpop.f32.mrb[0].mxu0
    %3016 = vdwg.mxu0
    %v3019 = vlaneseq
    %v3020 = vshrl.u32 %v3019, 7
    %v3021 = vsub.s32 0, %v3020
    %v3022 = vrot.slane %v869, %v3021
    %v3023 = vlaneseq
    %v3024 = vshrl.u32 %v3023, 7
    %v3025 = vsub.s32 1, %v3024
    %v3026 = vrot.slane %v869, %v3025
    %v3027 = vlaneseq
    %v3028 = vshrl.u32 %v3027, 7
    %v3029 = vsub.s32 2, %v3028
    %v3030 = vrot.slane %v869, %v3029
    %v3031 = vlaneseq
    %v3032 = vshrl.u32 %v3031, 7
    %v3033 = vsub.s32 3, %v3032
    %v3034 = vrot.slane %v869, %v3033
    %v3035 = vlaneseq
    %v3036 = vshrl.u32 %v3035, 7
    %v3037 = vsub.s32 4, %v3036
    %v3038 = vrot.slane %v869, %v3037
    %v3039 = vlaneseq
    %v3040 = vshrl.u32 %v3039, 7
    %v3041 = vsub.s32 5, %v3040
    %v3042 = vrot.slane %v869, %v3041
    %v3043 = vlaneseq
    %v3044 = vshrl.u32 %v3043, 7
    %v3045 = vsub.s32 6, %v3044
    %v3046 = vrot.slane %v869, %v3045
    %v3047 = vlaneseq
    %v3048 = vshrl.u32 %v3047, 7
    %v3049 = vsub.s32 7, %v3048
    %v3050 = vrot.slane %v869, %v3049
    %v3051 = vlaneseq
    %v3052 = vshrl.u32 %v3051, 7
    %v3053 = vsub.s32 0, %v3052
    %v3054 = vrot.slane %v870, %v3053
    %v3055 = vlaneseq
    %v3056 = vshrl.u32 %v3055, 7
    %v3057 = vsub.s32 1, %v3056
    %v3058 = vrot.slane %v870, %v3057
    %v3059 = vlaneseq
    %v3060 = vshrl.u32 %v3059, 7
    %v3061 = vsub.s32 2, %v3060
    %v3062 = vrot.slane %v870, %v3061
    %v3074 = vadd.f32 %v2796, %v3022
    %v3075 = vadd.f32 %v2798, %v3026
    %v3076 = vadd.f32 %v2839, %v3030
    %v3077 = vadd.f32 %v2841, %v3034
    %v3078 = vadd.f32 %v2882, %v3038
    %v3079 = vadd.f32 %v2884, %v3042
    %v3080 = vadd.f32 %v2925, %v3046
    %v3081 = vadd.f32 %v2927, %v3050
    %v3082 = vadd.f32 %v2968, %v3054
    %v3083 = vadd.f32 %v2970, %v3058
    %v3084 = vadd.f32 %v3011, %v3062
    %v3085 = vadd.f32 %v2800, %v3022
    %v3086 = vadd.f32 %v2802, %v3026
    %v3087 = vadd.f32 %v2843, %v3030
    %v3088 = vadd.f32 %v2845, %v3034
    %v3089 = vadd.f32 %v2886, %v3038
    %v3090 = vadd.f32 %v2888, %v3042
    %v3091 = vadd.f32 %v2929, %v3046
    %v3092 = vadd.f32 %v2931, %v3050
    %v3093 = vadd.f32 %v2972, %v3054
    %v3094 = vadd.f32 %v2974, %v3058
    %v3095 = vadd.f32 %v3014, %v3062
    %v3096 = vld [vmem:[%s5 + $0x2] sm:$0x1]
    %v3098 = vlaneseq
    %v3099 = vshrl.u32 %v3098, 7
    %v3100 = vsub.s32 0, %v3099
    %v3101 = vrot.slane %v3096, %v3100
    %v3103 = vadd.f32 %v3084, %v3101
    %v3104 = vadd.f32 %v3095, %v3101
    %3105 = vmax.xlane.f32.xlu0 %v3103
    %v3106 = vpop.xlane.xlu0 %3105
    %3107 = vmax.xlane.f32.xlu0 %v3104
    %v3108 = vpop.xlane.xlu0 %3107
    %v3109 = vsub.f32 %v3103, %v3106
    %v3110 = vsub.f32 %v3104, %v3108
    %v3111 = vmul.f32 %v3109, 1.442695
    %v3112 = vpow.pop %v3111
    %v3113 = vmul.f32 %v3110, 1.442695
    %v3114 = vpow.pop %v3113
    %3115 = vadd.xlane.f32.xlu0 %v3112
    %v3116 = vpop.xlane.xlu0 %3115
    %3117 = vadd.xlane.f32.xlu0 %v3114
    %v3118 = vpop.xlane.xlu0 %3117
    %v3119 = vrcp.pop %v3116
    %v3120 = vmul.f32 1.0, %v3119
    %v3121 = vrcp.pop %v3118
    %v3122 = vmul.f32 1.0, %v3121
    %vm3123 = vcmp.eq.f32.partialorder %v3103, %v3106
    %vm3124 = vcmp.eq.f32.partialorder %v3104, %v3108
    %v3125 = vsel %vm3123, %v60, 128
    %v3126 = vsel %vm3124, %v60, 128
    %v3127 = vand.u32 %v3125, 65535
    %v3128 = vshra.s32 %v3125, 16
    %v3129 = vcvt.s32.f32 %v3127
    %v3130 = vcvt.s32.f32 %v3128
    %3131 = vmin.xlane.f32.xlu0 %v3130
    %v3132 = vpop.xlane.xlu0 %3131
    %vm3133 = vcmp.eq.f32.partialorder %v3130, %v3132
    %v3134 = vsel %vm3133, %v3129, inf
    %3135 = vmin.xlane.f32.xlu0 %v3134
    %v3136 = vpop.xlane.xlu0 %3135
    %v3137 = vcvt.f32.s32 %v3136
    %v3138 = vcvt.f32.s32 %v3132
    %v3139 = vshll.u32 %v3138, 16
    %v3140 = vadd.s32 %v3139, %v3137
    %v3141 = vand.u32 %v3126, 65535
    %v3142 = vshra.s32 %v3126, 16
    %v3143 = vcvt.s32.f32 %v3141
    %v3144 = vcvt.s32.f32 %v3142
    %3145 = vmin.xlane.f32.xlu0 %v3144
    %v3146 = vpop.xlane.xlu0 %3145
    %vm3147 = vcmp.eq.f32.partialorder %v3144, %v3146
    %v3148 = vsel %vm3147, %v3143, inf
    %3149 = vmin.xlane.f32.xlu0 %v3148
    %v3150 = vpop.xlane.xlu0 %3149
    %v3151 = vcvt.f32.s32 %v3150
    %v3152 = vcvt.f32.s32 %v3146
    %v3153 = vshll.u32 %v3152, 16
    %v3154 = vadd.s32 %v3153, %v3151
    %vm3155 = vcmp.eq.s32.totalorder %v60, 0
    %v3156 = vcvt.s32.f32 %v3140
    %v3157 = vcvt.s32.f32 %v3154
    %v3158 = vmul.f32 %v3156, %v53
    %v3159 = vmul.f32 %v3157, %v54
    %vm3160 = vcmp.eq.s32.totalorder %v60, 1
    %v3161 = vmul.f32 %v3120, %v53
    %v3162 = vmul.f32 %v3122, %v54
    %3164 = vset.pattern.permute.xlu0 0
    %3165 = vperm.xlu0 %3164, %v3161
    %v3166 = vpop.permute.xlu0 %3165
    %3169 = vset.pattern.permute.xlu0 0
    %3170 = vperm.xlu0 %3169, %v3162
    %v3171 = vpop.permute.xlu0 %3170
    %v3173 = vsel %vm3160, %v3166, 0.0
    %v3174 = vsel %vm3160, %v3171, 0.0
    %3176 = vset.pattern.permute.xlu0 0
    %3177 = vperm.xlu0 %3176, %v3158
    %v3178 = vpop.permute.xlu0 %3177
    %3181 = vset.pattern.permute.xlu0 0
    %3182 = vperm.xlu0 %3181, %v3159
    %v3183 = vpop.permute.xlu0 %3182
    %v3185 = vsel %vm3155, %v3178, %v3173
    %v3186 = vsel %vm3155, %v3183, %v3174
    %3188 = vset.pattern.permute.xlu0 0
    %3189 = vperm.xlu0 %3188, %v53
    %v3190 = vpop.permute.xlu0 %3189
    %3193 = vset.pattern.permute.xlu0 0
    %3194 = vperm.xlu0 %3193, %v54
    %v3195 = vpop.permute.xlu0 %3194
    %v3197 = vmul.f32 %v3074, %v3190
    %v3198 = vmul.f32 %v3075, %v3190
    %v3199 = vmul.f32 %v3076, %v3190
    %v3200 = vmul.f32 %v3077, %v3190
    %v3201 = vmul.f32 %v3078, %v3190
    %v3202 = vmul.f32 %v3079, %v3190
    %v3203 = vmul.f32 %v3080, %v3190
    %v3204 = vmul.f32 %v3081, %v3190
    %v3205 = vmul.f32 %v3082, %v3190
    %v3206 = vmul.f32 %v3083, %v3190
    %v3207 = vmul.f32 %v3085, %v3195
    %v3208 = vmul.f32 %v3086, %v3195
    %v3209 = vmul.f32 %v3087, %v3195
    %v3210 = vmul.f32 %v3088, %v3195
    %v3211 = vmul.f32 %v3089, %v3195
    %v3212 = vmul.f32 %v3090, %v3195
    %v3213 = vmul.f32 %v3091, %v3195
    %v3214 = vmul.f32 %v3092, %v3195
    %v3215 = vmul.f32 %v3093, %v3195
    %v3216 = vmul.f32 %v3094, %v3195
    %3217 = vst [vmem:[#allocation7] sm:$0xff] %v3197
    %3218 = vst [vmem:[#allocation7 + $0x8] sm:$0xff] %v3198
    %3219 = vst [vmem:[#allocation7 + $0x10] sm:$0xff] %v3199
    %3220 = vst [vmem:[#allocation7 + $0x18] sm:$0xff] %v3200
    %3221 = vst [vmem:[#allocation7 + $0x20] sm:$0xff] %v3201
    %3222 = vst [vmem:[#allocation7 + $0x28] sm:$0xff] %v3202
    %3223 = vst [vmem:[#allocation7 + $0x30] sm:$0xff] %v3203
    %3224 = vst [vmem:[#allocation7 + $0x38] sm:$0xff] %v3204
    %3225 = vst [vmem:[#allocation7 + $0x40] sm:$0xff] %v3205
    %3226 = vst [vmem:[#allocation7 + $0x48] sm:$0xff] %v3206
    %3227 = vst [vmem:[#allocation7 + $0x58] sm:$0xff] %v3207
    %3228 = vst [vmem:[#allocation7 + $0x60] sm:$0xff] %v3208
    %3229 = vst [vmem:[#allocation7 + $0x68] sm:$0xff] %v3209
    %3230 = vst [vmem:[#allocation7 + $0x70] sm:$0xff] %v3210
    %3231 = vst [vmem:[#allocation7 + $0x78] sm:$0xff] %v3211
    %3232 = vst [vmem:[#allocation7 + $0x80] sm:$0xff] %v3212
    %3233 = vst [vmem:[#allocation7 + $0x88] sm:$0xff] %v3213
    %3234 = vst [vmem:[#allocation7 + $0x90] sm:$0xff] %v3214
    %3235 = vst [vmem:[#allocation7 + $0x98] sm:$0xff] %v3215
    %3236 = vst [vmem:[#allocation7 + $0xa0] sm:$0xff] %v3216
    %3237 = vst [vmem:[#allocation7 + $0x50] sm:$0xff] %v3185
    %3238 = vst [vmem:[#allocation7 + $0xa8] sm:$0xff] %v3186
    // Predicated region
    $region34: #{_pallas_forward.1} parent=1 // pred_check
      _
    $region35: #{_pallas_forward.1} parent=1 // pred_check_branch
      %3240 = sbr.rel (0) target = $region37
    $region36: #{_pallas_forward.1} parent=1 // pred_region
      %s3242 = ssub.s32 2816, 2816
      %3243 = vsyncadd [#allocation4], %s3242
      %s3244 = sshll.u32 [#allocation7], 4
      %s3245 = int_to_ptr.vmem [resolvable:$true] %s3244
      %3250 = dma.vmem_to_hbm [thread:$0]  %s3245, 2816, %s6, [#allocation4], 1408, 1408, 88
    $region37: #{_pallas_forward.1} parent=1 // pred_fallthru
      _
    // Predicated region
    $region38: #{_pallas_forward.1} parent=1 // pred_check
      _
    $region39: #{_pallas_forward.1} parent=1 // pred_check_branch
      %3252 = sbr.rel (0) target = $region41
    $region40: #{_pallas_forward.1} parent=1 // pred_region
      %3253 = dma.done [#allocation4], 2816
    $region41: #{_pallas_forward.1} parent=1 // pred_fallthru
      _
    %3254 = vsyncpa [#allocation3], 1
    %3255 = vsyncpa [#allocation6], 1
    %3256 = vsyncpa [#allocation4], 1

</llo_original>
